<compile_context>
chip_gen: v5e
topology: v5e:2x2
jax: 0.10.0
libtpu: 0.0.40
codegen_flags: <defaults>
</compile_context>

<pallas_src>
import jax
import jax.numpy as jnp
import numpy as np
from jax.experimental import pallas as pl
from jax.experimental.pallas import tpu as pltpu


# ----------------------------------------------------------------------------
# Fused kernel: Conv2d(1,1,4,s=2) + ReLU + MaxPool2d(2,s=2) + flatten + Linear + ReLU
#   (grid-less: one invocation processes the whole batch and all 768 outputs)
#   w_ref    : (16,)           SMEM  flattened 4x4 conv weight
#   bc_ref   : (1,)            SMEM  conv bias
#   x_ref    : (B, 16, H4, W4) VMEM  macro-strided image
#   wfc_ref  : (Kp, N)         VMEM  bf16 FC weight (row-major flatten, zero-padded K)
#   bfc_ref  : (1, N)          VMEM  f32 FC bias
#   o_ref    : (B, N)          VMEM  f32 output (lane-dense, 768 wide)
#   flat_ref : (B, Kp)         VMEM  f32 scratch holding the flattened pooled act.
# ----------------------------------------------------------------------------
def fused_conv_pool_fc_kernel(w_ref, bc_ref, x_ref, wfc_ref, bfc_ref, o_ref, flat_ref):
    B = x_ref.shape[0]
    H4, W4 = x_ref.shape[2], x_ref.shape[3]
    HP, WP = H4 - 1, W4 - 1                       # pooled spatial dims (15, 25)

    bias = bc_ref[0]
    wk = [w_ref[k] for k in range(16)]            # hoist SMEM scalar reads

    # ---- conv + relu + maxpool (fully unrolled, deduplicated patch loads) ----
    # conv@(2i+dp, 2j+dq) needs x[4i + (2dp+a), 4j + (2dq+c)]; with orr = 2dp+a
    # in 0..5 and occ = 2dq+c in 0..5 there are only 36 distinct shifted patches.
    # Each is a unit-stride slice of the macro-strided image; load it once and
    # scatter it into the (dp,dq) pool-window accumulators it contributes to.
    accs = [[None, None], [None, None]]
    for orr in range(6):
        po, ro = divmod(orr, 4)
        for occ in range(6):
            qo, rc = divmod(occ, 4)
            patch = x_ref[:, ro * 4 + rc, pl.ds(po, HP), pl.ds(qo, WP)]  # (B,HP,WP)
            for dp in range(2):
                a = orr - 2 * dp
                if not (0 <= a < 4):
                    continue
                for dq in range(2):
                    c = occ - 2 * dq
                    if not (0 <= c < 4):
                        continue
                    term = patch * wk[a * 4 + c]
                    accs[dp][dq] = term if accs[dp][dq] is None else accs[dp][dq] + term

    pooled = None
    for dp in range(2):
        for dq in range(2):
            cand = jnp.maximum(accs[dp][dq] + bias, 0.0)                 # ReLU(conv)
            pooled = cand if pooled is None else jnp.maximum(pooled, cand)  # maxpool
    # pooled: (B, HP, WP) f32

    # ---- flatten (B,HP,WP) -> (B,Kp) via static lane-offset stores ----
    # Row-major flatten (matches torch .view(B,-1)); pad lanes K..Kp stay zero so
    # the zero-padded weight rows contribute exactly 0.
    flat_ref[...] = jnp.zeros_like(flat_ref)
    for i in range(HP):
        flat_ref[:, pl.ds(i * WP, WP)] = pooled[:, i, :]

    # ---- fc_layer: single K=Kp matmul + bias + ReLU ----
    lhs = flat_ref[...].astype(jnp.bfloat16)                              # (B, Kp)
    out = jnp.dot(lhs, wfc_ref[...], preferred_element_type=jnp.float32)  # (B, N)
    o_ref[...] = jnp.maximum(out + bfc_ref[...], 0.0)


def conv_technical_discussion_forward(x, w_conv, b_conv, w_fc, b_fc):
    """x: (B, H, W) float32.  w_fc: (375, 768) (== PyTorch fc.weight.T).
    Returns (B, 768) float32."""
    B, H, W = x.shape
    assert H % 4 == 0 and W % 4 == 0, "demo wrapper assumes H, W divisible by 4"
    H4, W4 = H // 4, W // 4
    HP, WP = H4 - 1, W4 - 1                 # conv stride 2 then floor maxpool 2/2
    K, N = w_fc.shape
    assert K == HP * WP, f"fc in_features mismatch: {K} vs {HP * WP}"
    Kp = ((K + 127) // 128) * 128           # 375 -> 384 (lane-aligned contraction)

    # Layout plumbing (one small fused XLA transform, ~B*H*W*4 bytes):
    #   xt[b, r*4 + c, i, j] == x[b, 4*i + r, 4*j + c]
    # Because conv stride (2) * pool stride (2) == 4, every shifted read needed by
    # the fused conv+relu+maxpool becomes a unit-stride 2-D slice of xt.
    xt = jnp.transpose(x.reshape(B, H4, 4, W4, 4), (0, 2, 4, 1, 3)).reshape(B, 16, H4, W4)

    # FC weight kept 2-D (row-major flatten is done in-kernel on the activations),
    # zero-padded from K=375 to Kp=384 rows, cast to bf16 (f32 accumulation in-kernel).
    wfc_p = jnp.zeros((Kp, N), jnp.bfloat16).at[:K, :].set(w_fc.astype(jnp.bfloat16))
    bfc_r = b_fc.reshape(1, N).astype(jnp.float32)

    out = pl.pallas_call(
        fused_conv_pool_fc_kernel,
        out_shape=jax.ShapeDtypeStruct((B, N), jnp.float32),
        in_specs=[
            pl.BlockSpec(memory_space=pltpu.MemorySpace.SMEM),   # conv weight (16,)
            pl.BlockSpec(memory_space=pltpu.MemorySpace.SMEM),   # conv bias (1,)
            pl.BlockSpec(memory_space=pltpu.MemorySpace.VMEM),   # image (B,16,H4,W4)
            pl.BlockSpec(memory_space=pltpu.MemorySpace.VMEM),   # fc weight (Kp,N) bf16
            pl.BlockSpec(memory_space=pltpu.MemorySpace.VMEM),   # fc bias (1,N)
        ],
        out_specs=pl.BlockSpec(memory_space=pltpu.MemorySpace.VMEM),
        scratch_shapes=[pltpu.VMEM((B, Kp), jnp.float32)],       # flattened activations
    )(w_conv.reshape(16).astype(jnp.float32),
      b_conv.reshape(1).astype(jnp.float32),
      xt, wfc_p, bfc_r)
    return out


# ----------------------------------------------------------------------------
# Pure-JAX f32 reference (independent of the kernel math), for correctness.
# ----------------------------------------------------------------------------
def reference_forward(x, w_conv, b_conv, w_fc, b_fc):
    xi = x[:, None, :, :]                                            # NCHW, C=1
    conv = jax.lax.conv_general_dilated(
        xi, w_conv[None, None, :, :], window_strides=(2, 2), padding="VALID")
    conv = conv + b_conv[0]
    r = jnp.maximum(conv, 0.0)
    pooled = jax.lax.reduce_window(
        r, -jnp.inf, jax.lax.max, (1, 1, 2, 2), (1, 1, 2, 2), "VALID")
    flat = pooled.reshape(x.shape[0], -1)
    return jnp.maximum(flat @ w_fc + b_fc, 0.0)


if __name__ == "__main__":
    # Input shape chosen so that flattened seq1 output == 375 (n_length == 1 case):
    # (64-4)//2+1 = 31 -> pool -> 15 ;  (104-4)//2+1 = 51 -> pool -> 25 ; 15*25 = 375.
    B, H, W = 2, 64, 104
    key = jax.random.PRNGKey(0)
    k_x, k_wc, k_bc, k_wf, k_bf = jax.random.split(key, 5)

    x = jax.random.normal(k_x, (B, H, W), jnp.float32)
    w_conv = jax.random.normal(k_wc, (4, 4), jnp.float32) * 0.25        # Conv2d(1,1,4) weight
    b_conv = jax.random.normal(k_bc, (1,), jnp.float32) * 0.1           # Conv2d bias
    w_fc = jax.random.normal(k_wf, (375, 768), jnp.float32) * 0.05      # Linear(375,768).weight.T
    b_fc = jax.random.normal(k_bf, (768,), jnp.float32) * 0.05          # Linear bias

    fwd = jax.jit(conv_technical_discussion_forward)
    out = jax.block_until_ready(fwd(x, w_conv, b_conv, w_fc, b_fc))

    ref = jax.block_until_ready(reference_forward(x, w_conv, b_conv, w_fc, b_fc))
    # Tolerance loosened vs pure f32 because FC weights and activations go through
    # the MXU in bfloat16 (f32 accumulation) — deliberate speed/accuracy trade.
    np.testing.assert_allclose(np.asarray(out), np.asarray(ref), rtol=2e-2, atol=2e-2)
    assert out.shape == (B, 768)

    print("KERNEL_OK")
</pallas_src>

<mosaic_0001>
module attributes {stable_mosaic.version = 11 : i64} {
  func.func @fused_conv_pool_fc_kernel(%arg0: memref<16xf32, #tpu.memory_space<smem>>, %arg1: memref<1xf32, #tpu.memory_space<smem>>, %arg2: memref<2x16x16x26xf32, #tpu.memory_space<vmem>>, %arg3: memref<384x768xbf16, #tpu.memory_space<vmem>>, %arg4: memref<1x768xf32, #tpu.memory_space<vmem>>, %arg5: memref<2x768xf32, #tpu.memory_space<vmem>>, %arg6: memref<2x384xf32, #tpu.memory_space<vmem>>) attributes {dimension_semantics = [], scalar_prefetch = 0 : i64, scratch_operands = 1 : i64, tpu.core_type = #tpu.core_type<tc>} {
    %c0 = arith.constant 0 : index
    %0 = memref.load %arg1[%c0] : memref<1xf32, #tpu.memory_space<smem>>
    %c0_0 = arith.constant 0 : index
    %1 = memref.load %arg0[%c0_0] : memref<16xf32, #tpu.memory_space<smem>>
    %c1 = arith.constant 1 : index
    %2 = memref.load %arg0[%c1] : memref<16xf32, #tpu.memory_space<smem>>
    %c2 = arith.constant 2 : index
    %3 = memref.load %arg0[%c2] : memref<16xf32, #tpu.memory_space<smem>>
    %c3 = arith.constant 3 : index
    %4 = memref.load %arg0[%c3] : memref<16xf32, #tpu.memory_space<smem>>
    %c4 = arith.constant 4 : index
    %5 = memref.load %arg0[%c4] : memref<16xf32, #tpu.memory_space<smem>>
    %c5 = arith.constant 5 : index
    %6 = memref.load %arg0[%c5] : memref<16xf32, #tpu.memory_space<smem>>
    %c6 = arith.constant 6 : index
    %7 = memref.load %arg0[%c6] : memref<16xf32, #tpu.memory_space<smem>>
    %c7 = arith.constant 7 : index
    %8 = memref.load %arg0[%c7] : memref<16xf32, #tpu.memory_space<smem>>
    %c8 = arith.constant 8 : index
    %9 = memref.load %arg0[%c8] : memref<16xf32, #tpu.memory_space<smem>>
    %c9 = arith.constant 9 : index
    %10 = memref.load %arg0[%c9] : memref<16xf32, #tpu.memory_space<smem>>
    %c10 = arith.constant 10 : index
    %11 = memref.load %arg0[%c10] : memref<16xf32, #tpu.memory_space<smem>>
    %c11 = arith.constant 11 : index
    %12 = memref.load %arg0[%c11] : memref<16xf32, #tpu.memory_space<smem>>
    %c12 = arith.constant 12 : index
    %13 = memref.load %arg0[%c12] : memref<16xf32, #tpu.memory_space<smem>>
    %c13 = arith.constant 13 : index
    %14 = memref.load %arg0[%c13] : memref<16xf32, #tpu.memory_space<smem>>
    %c14 = arith.constant 14 : index
    %15 = memref.load %arg0[%c14] : memref<16xf32, #tpu.memory_space<smem>>
    %c15 = arith.constant 15 : index
    %16 = memref.load %arg0[%c15] : memref<16xf32, #tpu.memory_space<smem>>
    %c0_1 = arith.constant 0 : index
    %c0_2 = arith.constant 0 : index
    %c0_3 = arith.constant 0 : index
    %c0_4 = arith.constant 0 : index
    %17 = vector.load %arg2[%c0_1, %c0_2, %c0_3, %c0_4] : memref<2x16x16x26xf32, #tpu.memory_space<vmem>>, vector<2x1x15x25xf32>
    %18 = vector.shape_cast %17 : vector<2x1x15x25xf32> to vector<2x15x25xf32>
    %19 = vector.broadcast %1 : f32 to vector<2x15x25xf32>
    %20 = arith.mulf %18, %19 : vector<2x15x25xf32>
    %c0_5 = arith.constant 0 : index
    %c1_6 = arith.constant 1 : index
    %c0_7 = arith.constant 0 : index
    %c0_8 = arith.constant 0 : index
    %21 = vector.load %arg2[%c0_5, %c1_6, %c0_7, %c0_8] : memref<2x16x16x26xf32, #tpu.memory_space<vmem>>, vector<2x1x15x25xf32>
    %22 = vector.shape_cast %21 : vector<2x1x15x25xf32> to vector<2x15x25xf32>
    %23 = vector.broadcast %2 : f32 to vector<2x15x25xf32>
    %24 = arith.mulf %22, %23 : vector<2x15x25xf32>
    %25 = arith.addf %20, %24 : vector<2x15x25xf32>
    %c0_9 = arith.constant 0 : index
    %c2_10 = arith.constant 2 : index
    %c0_11 = arith.constant 0 : index
    %c0_12 = arith.constant 0 : index
    %26 = vector.load %arg2[%c0_9, %c2_10, %c0_11, %c0_12] : memref<2x16x16x26xf32, #tpu.memory_space<vmem>>, vector<2x1x15x25xf32>
    %27 = vector.shape_cast %26 : vector<2x1x15x25xf32> to vector<2x15x25xf32>
    %28 = vector.broadcast %3 : f32 to vector<2x15x25xf32>
    %29 = arith.mulf %27, %28 : vector<2x15x25xf32>
    %30 = arith.addf %25, %29 : vector<2x15x25xf32>
    %31 = vector.broadcast %1 : f32 to vector<2x15x25xf32>
    %32 = arith.mulf %27, %31 : vector<2x15x25xf32>
    %c0_13 = arith.constant 0 : index
    %c3_14 = arith.constant 3 : index
    %c0_15 = arith.constant 0 : index
    %c0_16 = arith.constant 0 : index
    %33 = vector.load %arg2[%c0_13, %c3_14, %c0_15, %c0_16] : memref<2x16x16x26xf32, #tpu.memory_space<vmem>>, vector<2x1x15x25xf32>
    %34 = vector.shape_cast %33 : vector<2x1x15x25xf32> to vector<2x15x25xf32>
    %35 = vector.broadcast %4 : f32 to vector<2x15x25xf32>
    %36 = arith.mulf %34, %35 : vector<2x15x25xf32>
    %37 = arith.addf %30, %36 : vector<2x15x25xf32>
    %38 = vector.broadcast %2 : f32 to vector<2x15x25xf32>
    %39 = arith.mulf %34, %38 : vector<2x15x25xf32>
    %40 = arith.addf %32, %39 : vector<2x15x25xf32>
    %c0_17 = arith.constant 0 : index
    %c0_18 = arith.constant 0 : index
    %c0_19 = arith.constant 0 : index
    %c1_20 = arith.constant 1 : index
    %41 = vector.load %arg2[%c0_17, %c0_18, %c0_19, %c1_20] : memref<2x16x16x26xf32, #tpu.memory_space<vmem>>, vector<2x1x15x25xf32>
    %42 = vector.shape_cast %41 : vector<2x1x15x25xf32> to vector<2x15x25xf32>
    %43 = vector.broadcast %3 : f32 to vector<2x15x25xf32>
    %44 = arith.mulf %42, %43 : vector<2x15x25xf32>
    %45 = arith.addf %40, %44 : vector<2x15x25xf32>
    %c0_21 = arith.constant 0 : index
    %c1_22 = arith.constant 1 : index
    %c0_23 = arith.constant 0 : index
    %c1_24 = arith.constant 1 : index
    %46 = vector.load %arg2[%c0_21, %c1_22, %c0_23, %c1_24] : memref<2x16x16x26xf32, #tpu.memory_space<vmem>>, vector<2x1x15x25xf32>
    %47 = vector.shape_cast %46 : vector<2x1x15x25xf32> to vector<2x15x25xf32>
    %48 = vector.broadcast %4 : f32 to vector<2x15x25xf32>
    %49 = arith.mulf %47, %48 : vector<2x15x25xf32>
    %50 = arith.addf %45, %49 : vector<2x15x25xf32>
    %c0_25 = arith.constant 0 : index
    %c4_26 = arith.constant 4 : index
    %c0_27 = arith.constant 0 : index
    %c0_28 = arith.constant 0 : index
    %51 = vector.load %arg2[%c0_25, %c4_26, %c0_27, %c0_28] : memref<2x16x16x26xf32, #tpu.memory_space<vmem>>, vector<2x1x15x25xf32>
    %52 = vector.shape_cast %51 : vector<2x1x15x25xf32> to vector<2x15x25xf32>
    %53 = vector.broadcast %5 : f32 to vector<2x15x25xf32>
    %54 = arith.mulf %52, %53 : vector<2x15x25xf32>
    %55 = arith.addf %37, %54 : vector<2x15x25xf32>
    %c0_29 = arith.constant 0 : index
    %c5_30 = arith.constant 5 : index
    %c0_31 = arith.constant 0 : index
    %c0_32 = arith.constant 0 : index
    %56 = vector.load %arg2[%c0_29, %c5_30, %c0_31, %c0_32] : memref<2x16x16x26xf32, #tpu.memory_space<vmem>>, vector<2x1x15x25xf32>
    %57 = vector.shape_cast %56 : vector<2x1x15x25xf32> to vector<2x15x25xf32>
    %58 = vector.broadcast %6 : f32 to vector<2x15x25xf32>
    %59 = arith.mulf %57, %58 : vector<2x15x25xf32>
    %60 = arith.addf %55, %59 : vector<2x15x25xf32>
    %c0_33 = arith.constant 0 : index
    %c6_34 = arith.constant 6 : index
    %c0_35 = arith.constant 0 : index
    %c0_36 = arith.constant 0 : index
    %61 = vector.load %arg2[%c0_33, %c6_34, %c0_35, %c0_36] : memref<2x16x16x26xf32, #tpu.memory_space<vmem>>, vector<2x1x15x25xf32>
    %62 = vector.shape_cast %61 : vector<2x1x15x25xf32> to vector<2x15x25xf32>
    %63 = vector.broadcast %7 : f32 to vector<2x15x25xf32>
    %64 = arith.mulf %62, %63 : vector<2x15x25xf32>
    %65 = arith.addf %60, %64 : vector<2x15x25xf32>
    %66 = vector.broadcast %5 : f32 to vector<2x15x25xf32>
    %67 = arith.mulf %62, %66 : vector<2x15x25xf32>
    %68 = arith.addf %50, %67 : vector<2x15x25xf32>
    %c0_37 = arith.constant 0 : index
    %c7_38 = arith.constant 7 : index
    %c0_39 = arith.constant 0 : index
    %c0_40 = arith.constant 0 : index
    %69 = vector.load %arg2[%c0_37, %c7_38, %c0_39, %c0_40] : memref<2x16x16x26xf32, #tpu.memory_space<vmem>>, vector<2x1x15x25xf32>
    %70 = vector.shape_cast %69 : vector<2x1x15x25xf32> to vector<2x15x25xf32>
    %71 = vector.broadcast %8 : f32 to vector<2x15x25xf32>
    %72 = arith.mulf %70, %71 : vector<2x15x25xf32>
    %73 = arith.addf %65, %72 : vector<2x15x25xf32>
    %74 = vector.broadcast %6 : f32 to vector<2x15x25xf32>
    %75 = arith.mulf %70, %74 : vector<2x15x25xf32>
    %76 = arith.addf %68, %75 : vector<2x15x25xf32>
    %c0_41 = arith.constant 0 : index
    %c4_42 = arith.constant 4 : index
    %c0_43 = arith.constant 0 : index
    %c1_44 = arith.constant 1 : index
    %77 = vector.load %arg2[%c0_41, %c4_42, %c0_43, %c1_44] : memref<2x16x16x26xf32, #tpu.memory_space<vmem>>, vector<2x1x15x25xf32>
    %78 = vector.shape_cast %77 : vector<2x1x15x25xf32> to vector<2x15x25xf32>
    %79 = vector.broadcast %7 : f32 to vector<2x15x25xf32>
    %80 = arith.mulf %78, %79 : vector<2x15x25xf32>
    %81 = arith.addf %76, %80 : vector<2x15x25xf32>
    %c0_45 = arith.constant 0 : index
    %c5_46 = arith.constant 5 : index
    %c0_47 = arith.constant 0 : index
    %c1_48 = arith.constant 1 : index
    %82 = vector.load %arg2[%c0_45, %c5_46, %c0_47, %c1_48] : memref<2x16x16x26xf32, #tpu.memory_space<vmem>>, vector<2x1x15x25xf32>
    %83 = vector.shape_cast %82 : vector<2x1x15x25xf32> to vector<2x15x25xf32>
    %84 = vector.broadcast %8 : f32 to vector<2x15x25xf32>
    %85 = arith.mulf %83, %84 : vector<2x15x25xf32>
    %86 = arith.addf %81, %85 : vector<2x15x25xf32>
    %c0_49 = arith.constant 0 : index
    %c8_50 = arith.constant 8 : index
    %c0_51 = arith.constant 0 : index
    %c0_52 = arith.constant 0 : index
    %87 = vector.load %arg2[%c0_49, %c8_50, %c0_51, %c0_52] : memref<2x16x16x26xf32, #tpu.memory_space<vmem>>, vector<2x1x15x25xf32>
    %88 = vector.shape_cast %87 : vector<2x1x15x25xf32> to vector<2x15x25xf32>
    %89 = vector.broadcast %9 : f32 to vector<2x15x25xf32>
    %90 = arith.mulf %88, %89 : vector<2x15x25xf32>
    %91 = arith.addf %73, %90 : vector<2x15x25xf32>
    %92 = vector.broadcast %1 : f32 to vector<2x15x25xf32>
    %93 = arith.mulf %88, %92 : vector<2x15x25xf32>
    %c0_53 = arith.constant 0 : index
    %c9_54 = arith.constant 9 : index
    %c0_55 = arith.constant 0 : index
    %c0_56 = arith.constant 0 : index
    %94 = vector.load %arg2[%c0_53, %c9_54, %c0_55, %c0_56] : memref<2x16x16x26xf32, #tpu.memory_space<vmem>>, vector<2x1x15x25xf32>
    %95 = vector.shape_cast %94 : vector<2x1x15x25xf32> to vector<2x15x25xf32>
    %96 = vector.broadcast %10 : f32 to vector<2x15x25xf32>
    %97 = arith.mulf %95, %96 : vector<2x15x25xf32>
    %98 = arith.addf %91, %97 : vector<2x15x25xf32>
    %99 = vector.broadcast %2 : f32 to vector<2x15x25xf32>
    %100 = arith.mulf %95, %99 : vector<2x15x25xf32>
    %101 = arith.addf %93, %100 : vector<2x15x25xf32>
    %c0_57 = arith.constant 0 : index
    %c10_58 = arith.constant 10 : index
    %c0_59 = arith.constant 0 : index
    %c0_60 = arith.constant 0 : index
    %102 = vector.load %arg2[%c0_57, %c10_58, %c0_59, %c0_60] : memref<2x16x16x26xf32, #tpu.memory_space<vmem>>, vector<2x1x15x25xf32>
    %103 = vector.shape_cast %102 : vector<2x1x15x25xf32> to vector<2x15x25xf32>
    %104 = vector.broadcast %11 : f32 to vector<2x15x25xf32>
    %105 = arith.mulf %103, %104 : vector<2x15x25xf32>
    %106 = arith.addf %98, %105 : vector<2x15x25xf32>
    %107 = vector.broadcast %9 : f32 to vector<2x15x25xf32>
    %108 = arith.mulf %103, %107 : vector<2x15x25xf32>
    %109 = arith.addf %86, %108 : vector<2x15x25xf32>
    %110 = vector.broadcast %3 : f32 to vector<2x15x25xf32>
    %111 = arith.mulf %103, %110 : vector<2x15x25xf32>
    %112 = arith.addf %101, %111 : vector<2x15x25xf32>
    %113 = vector.broadcast %1 : f32 to vector<2x15x25xf32>
    %114 = arith.mulf %103, %113 : vector<2x15x25xf32>
    %c0_61 = arith.constant 0 : index
    %c11_62 = arith.constant 11 : index
    %c0_63 = arith.constant 0 : index
    %c0_64 = arith.constant 0 : index
    %115 = vector.load %arg2[%c0_61, %c11_62, %c0_63, %c0_64] : memref<2x16x16x26xf32, #tpu.memory_space<vmem>>, vector<2x1x15x25xf32>
    %116 = vector.shape_cast %115 : vector<2x1x15x25xf32> to vector<2x15x25xf32>
    %117 = vector.broadcast %12 : f32 to vector<2x15x25xf32>
    %118 = arith.mulf %116, %117 : vector<2x15x25xf32>
    %119 = arith.addf %106, %118 : vector<2x15x25xf32>
    %120 = vector.broadcast %10 : f32 to vector<2x15x25xf32>
    %121 = arith.mulf %116, %120 : vector<2x15x25xf32>
    %122 = arith.addf %109, %121 : vector<2x15x25xf32>
    %123 = vector.broadcast %4 : f32 to vector<2x15x25xf32>
    %124 = arith.mulf %116, %123 : vector<2x15x25xf32>
    %125 = arith.addf %112, %124 : vector<2x15x25xf32>
    %126 = vector.broadcast %2 : f32 to vector<2x15x25xf32>
    %127 = arith.mulf %116, %126 : vector<2x15x25xf32>
    %128 = arith.addf %114, %127 : vector<2x15x25xf32>
    %c0_65 = arith.constant 0 : index
    %c8_66 = arith.constant 8 : index
    %c0_67 = arith.constant 0 : index
    %c1_68 = arith.constant 1 : index
    %129 = vector.load %arg2[%c0_65, %c8_66, %c0_67, %c1_68] : memref<2x16x16x26xf32, #tpu.memory_space<vmem>>, vector<2x1x15x25xf32>
    %130 = vector.shape_cast %129 : vector<2x1x15x25xf32> to vector<2x15x25xf32>
    %131 = vector.broadcast %11 : f32 to vector<2x15x25xf32>
    %132 = arith.mulf %130, %131 : vector<2x15x25xf32>
    %133 = arith.addf %122, %132 : vector<2x15x25xf32>
    %134 = vector.broadcast %3 : f32 to vector<2x15x25xf32>
    %135 = arith.mulf %130, %134 : vector<2x15x25xf32>
    %136 = arith.addf %128, %135 : vector<2x15x25xf32>
    %c0_69 = arith.constant 0 : index
    %c9_70 = arith.constant 9 : index
    %c0_71 = arith.constant 0 : index
    %c1_72 = arith.constant 1 : index
    %137 = vector.load %arg2[%c0_69, %c9_70, %c0_71, %c1_72] : memref<2x16x16x26xf32, #tpu.memory_space<vmem>>, vector<2x1x15x25xf32>
    %138 = vector.shape_cast %137 : vector<2x1x15x25xf32> to vector<2x15x25xf32>
    %139 = vector.broadcast %12 : f32 to vector<2x15x25xf32>
    %140 = arith.mulf %138, %139 : vector<2x15x25xf32>
    %141 = arith.addf %133, %140 : vector<2x15x25xf32>
    %142 = vector.broadcast %4 : f32 to vector<2x15x25xf32>
    %143 = arith.mulf %138, %142 : vector<2x15x25xf32>
    %144 = arith.addf %136, %143 : vector<2x15x25xf32>
    %c0_73 = arith.constant 0 : index
    %c12_74 = arith.constant 12 : index
    %c0_75 = arith.constant 0 : index
    %c0_76 = arith.constant 0 : index
    %145 = vector.load %arg2[%c0_73, %c12_74, %c0_75, %c0_76] : memref<2x16x16x26xf32, #tpu.memory_space<vmem>>, vector<2x1x15x25xf32>
    %146 = vector.shape_cast %145 : vector<2x1x15x25xf32> to vector<2x15x25xf32>
    %147 = vector.broadcast %13 : f32 to vector<2x15x25xf32>
    %148 = arith.mulf %146, %147 : vector<2x15x25xf32>
    %149 = arith.addf %119, %148 : vector<2x15x25xf32>
    %150 = vector.broadcast %5 : f32 to vector<2x15x25xf32>
    %151 = arith.mulf %146, %150 : vector<2x15x25xf32>
    %152 = arith.addf %125, %151 : vector<2x15x25xf32>
    %c0_77 = arith.constant 0 : index
    %c13_78 = arith.constant 13 : index
    %c0_79 = arith.constant 0 : index
    %c0_80 = arith.constant 0 : index
    %153 = vector.load %arg2[%c0_77, %c13_78, %c0_79, %c0_80] : memref<2x16x16x26xf32, #tpu.memory_space<vmem>>, vector<2x1x15x25xf32>
    %154 = vector.shape_cast %153 : vector<2x1x15x25xf32> to vector<2x15x25xf32>
    %155 = vector.broadcast %14 : f32 to vector<2x15x25xf32>
    %156 = arith.mulf %154, %155 : vector<2x15x25xf32>
    %157 = arith.addf %149, %156 : vector<2x15x25xf32>
    %158 = vector.broadcast %6 : f32 to vector<2x15x25xf32>
    %159 = arith.mulf %154, %158 : vector<2x15x25xf32>
    %160 = arith.addf %152, %159 : vector<2x15x25xf32>
    %c0_81 = arith.constant 0 : index
    %c14_82 = arith.constant 14 : index
    %c0_83 = arith.constant 0 : index
    %c0_84 = arith.constant 0 : index
    %161 = vector.load %arg2[%c0_81, %c14_82, %c0_83, %c0_84] : memref<2x16x16x26xf32, #tpu.memory_space<vmem>>, vector<2x1x15x25xf32>
    %162 = vector.shape_cast %161 : vector<2x1x15x25xf32> to vector<2x15x25xf32>
    %163 = vector.broadcast %15 : f32 to vector<2x15x25xf32>
    %164 = arith.mulf %162, %163 : vector<2x15x25xf32>
    %165 = arith.addf %157, %164 : vector<2x15x25xf32>
    %166 = vector.broadcast %13 : f32 to vector<2x15x25xf32>
    %167 = arith.mulf %162, %166 : vector<2x15x25xf32>
    %168 = arith.addf %141, %167 : vector<2x15x25xf32>
    %169 = vector.broadcast %7 : f32 to vector<2x15x25xf32>
    %170 = arith.mulf %162, %169 : vector<2x15x25xf32>
    %171 = arith.addf %160, %170 : vector<2x15x25xf32>
    %172 = vector.broadcast %5 : f32 to vector<2x15x25xf32>
    %173 = arith.mulf %162, %172 : vector<2x15x25xf32>
    %174 = arith.addf %144, %173 : vector<2x15x25xf32>
    %c0_85 = arith.constant 0 : index
    %c15_86 = arith.constant 15 : index
    %c0_87 = arith.constant 0 : index
    %c0_88 = arith.constant 0 : index
    %175 = vector.load %arg2[%c0_85, %c15_86, %c0_87, %c0_88] : memref<2x16x16x26xf32, #tpu.memory_space<vmem>>, vector<2x1x15x25xf32>
    %176 = vector.shape_cast %175 : vector<2x1x15x25xf32> to vector<2x15x25xf32>
    %177 = vector.broadcast %16 : f32 to vector<2x15x25xf32>
    %178 = arith.mulf %176, %177 : vector<2x15x25xf32>
    %179 = arith.addf %165, %178 : vector<2x15x25xf32>
    %180 = vector.broadcast %14 : f32 to vector<2x15x25xf32>
    %181 = arith.mulf %176, %180 : vector<2x15x25xf32>
    %182 = arith.addf %168, %181 : vector<2x15x25xf32>
    %183 = vector.broadcast %8 : f32 to vector<2x15x25xf32>
    %184 = arith.mulf %176, %183 : vector<2x15x25xf32>
    %185 = arith.addf %171, %184 : vector<2x15x25xf32>
    %186 = vector.broadcast %6 : f32 to vector<2x15x25xf32>
    %187 = arith.mulf %176, %186 : vector<2x15x25xf32>
    %188 = arith.addf %174, %187 : vector<2x15x25xf32>
    %c0_89 = arith.constant 0 : index
    %c12_90 = arith.constant 12 : index
    %c0_91 = arith.constant 0 : index
    %c1_92 = arith.constant 1 : index
    %189 = vector.load %arg2[%c0_89, %c12_90, %c0_91, %c1_92] : memref<2x16x16x26xf32, #tpu.memory_space<vmem>>, vector<2x1x15x25xf32>
    %190 = vector.shape_cast %189 : vector<2x1x15x25xf32> to vector<2x15x25xf32>
    %191 = vector.broadcast %15 : f32 to vector<2x15x25xf32>
    %192 = arith.mulf %190, %191 : vector<2x15x25xf32>
    %193 = arith.addf %182, %192 : vector<2x15x25xf32>
    %194 = vector.broadcast %7 : f32 to vector<2x15x25xf32>
    %195 = arith.mulf %190, %194 : vector<2x15x25xf32>
    %196 = arith.addf %188, %195 : vector<2x15x25xf32>
    %c0_93 = arith.constant 0 : index
    %c13_94 = arith.constant 13 : index
    %c0_95 = arith.constant 0 : index
    %c1_96 = arith.constant 1 : index
    %197 = vector.load %arg2[%c0_93, %c13_94, %c0_95, %c1_96] : memref<2x16x16x26xf32, #tpu.memory_space<vmem>>, vector<2x1x15x25xf32>
    %198 = vector.shape_cast %197 : vector<2x1x15x25xf32> to vector<2x15x25xf32>
    %199 = vector.broadcast %16 : f32 to vector<2x15x25xf32>
    %200 = arith.mulf %198, %199 : vector<2x15x25xf32>
    %201 = arith.addf %193, %200 : vector<2x15x25xf32>
    %202 = vector.broadcast %8 : f32 to vector<2x15x25xf32>
    %203 = arith.mulf %198, %202 : vector<2x15x25xf32>
    %204 = arith.addf %196, %203 : vector<2x15x25xf32>
    %c0_97 = arith.constant 0 : index
    %c0_98 = arith.constant 0 : index
    %c1_99 = arith.constant 1 : index
    %c0_100 = arith.constant 0 : index
    %205 = vector.load %arg2[%c0_97, %c0_98, %c1_99, %c0_100] : memref<2x16x16x26xf32, #tpu.memory_space<vmem>>, vector<2x1x15x25xf32>
    %206 = vector.shape_cast %205 : vector<2x1x15x25xf32> to vector<2x15x25xf32>
    %207 = vector.broadcast %9 : f32 to vector<2x15x25xf32>
    %208 = arith.mulf %206, %207 : vector<2x15x25xf32>
    %209 = arith.addf %185, %208 : vector<2x15x25xf32>
    %c0_101 = arith.constant 0 : index
    %c1_102 = arith.constant 1 : index
    %c1_103 = arith.constant 1 : index
    %c0_104 = arith.constant 0 : index
    %210 = vector.load %arg2[%c0_101, %c1_102, %c1_103, %c0_104] : memref<2x16x16x26xf32, #tpu.memory_space<vmem>>, vector<2x1x15x25xf32>
    %211 = vector.shape_cast %210 : vector<2x1x15x25xf32> to vector<2x15x25xf32>
    %212 = vector.broadcast %10 : f32 to vector<2x15x25xf32>
    %213 = arith.mulf %211, %212 : vector<2x15x25xf32>
    %214 = arith.addf %209, %213 : vector<2x15x25xf32>
    %c0_105 = arith.constant 0 : index
    %c2_106 = arith.constant 2 : index
    %c1_107 = arith.constant 1 : index
    %c0_108 = arith.constant 0 : index
    %215 = vector.load %arg2[%c0_105, %c2_106, %c1_107, %c0_108] : memref<2x16x16x26xf32, #tpu.memory_space<vmem>>, vector<2x1x15x25xf32>
    %216 = vector.shape_cast %215 : vector<2x1x15x25xf32> to vector<2x15x25xf32>
    %217 = vector.broadcast %11 : f32 to vector<2x15x25xf32>
    %218 = arith.mulf %216, %217 : vector<2x15x25xf32>
    %219 = arith.addf %214, %218 : vector<2x15x25xf32>
    %220 = vector.broadcast %9 : f32 to vector<2x15x25xf32>
    %221 = arith.mulf %216, %220 : vector<2x15x25xf32>
    %222 = arith.addf %204, %221 : vector<2x15x25xf32>
    %c0_109 = arith.constant 0 : index
    %c3_110 = arith.constant 3 : index
    %c1_111 = arith.constant 1 : index
    %c0_112 = arith.constant 0 : index
    %223 = vector.load %arg2[%c0_109, %c3_110, %c1_111, %c0_112] : memref<2x16x16x26xf32, #tpu.memory_space<vmem>>, vector<2x1x15x25xf32>
    %224 = vector.shape_cast %223 : vector<2x1x15x25xf32> to vector<2x15x25xf32>
    %225 = vector.broadcast %12 : f32 to vector<2x15x25xf32>
    %226 = arith.mulf %224, %225 : vector<2x15x25xf32>
    %227 = arith.addf %219, %226 : vector<2x15x25xf32>
    %228 = vector.broadcast %10 : f32 to vector<2x15x25xf32>
    %229 = arith.mulf %224, %228 : vector<2x15x25xf32>
    %230 = arith.addf %222, %229 : vector<2x15x25xf32>
    %c0_113 = arith.constant 0 : index
    %c0_114 = arith.constant 0 : index
    %c1_115 = arith.constant 1 : index
    %c1_116 = arith.constant 1 : index
    %231 = vector.load %arg2[%c0_113, %c0_114, %c1_115, %c1_116] : memref<2x16x16x26xf32, #tpu.memory_space<vmem>>, vector<2x1x15x25xf32>
    %232 = vector.shape_cast %231 : vector<2x1x15x25xf32> to vector<2x15x25xf32>
    %233 = vector.broadcast %11 : f32 to vector<2x15x25xf32>
    %234 = arith.mulf %232, %233 : vector<2x15x25xf32>
    %235 = arith.addf %230, %234 : vector<2x15x25xf32>
    %c0_117 = arith.constant 0 : index
    %c1_118 = arith.constant 1 : index
    %c1_119 = arith.constant 1 : index
    %c1_120 = arith.constant 1 : index
    %236 = vector.load %arg2[%c0_117, %c1_118, %c1_119, %c1_120] : memref<2x16x16x26xf32, #tpu.memory_space<vmem>>, vector<2x1x15x25xf32>
    %237 = vector.shape_cast %236 : vector<2x1x15x25xf32> to vector<2x15x25xf32>
    %238 = vector.broadcast %12 : f32 to vector<2x15x25xf32>
    %239 = arith.mulf %237, %238 : vector<2x15x25xf32>
    %240 = arith.addf %235, %239 : vector<2x15x25xf32>
    %c0_121 = arith.constant 0 : index
    %c4_122 = arith.constant 4 : index
    %c1_123 = arith.constant 1 : index
    %c0_124 = arith.constant 0 : index
    %241 = vector.load %arg2[%c0_121, %c4_122, %c1_123, %c0_124] : memref<2x16x16x26xf32, #tpu.memory_space<vmem>>, vector<2x1x15x25xf32>
    %242 = vector.shape_cast %241 : vector<2x1x15x25xf32> to vector<2x15x25xf32>
    %243 = vector.broadcast %13 : f32 to vector<2x15x25xf32>
    %244 = arith.mulf %242, %243 : vector<2x15x25xf32>
    %245 = arith.addf %227, %244 : vector<2x15x25xf32>
    %c0_125 = arith.constant 0 : index
    %c5_126 = arith.constant 5 : index
    %c1_127 = arith.constant 1 : index
    %c0_128 = arith.constant 0 : index
    %246 = vector.load %arg2[%c0_125, %c5_126, %c1_127, %c0_128] : memref<2x16x16x26xf32, #tpu.memory_space<vmem>>, vector<2x1x15x25xf32>
    %247 = vector.shape_cast %246 : vector<2x1x15x25xf32> to vector<2x15x25xf32>
    %248 = vector.broadcast %14 : f32 to vector<2x15x25xf32>
    %249 = arith.mulf %247, %248 : vector<2x15x25xf32>
    %250 = arith.addf %245, %249 : vector<2x15x25xf32>
    %c0_129 = arith.constant 0 : index
    %c6_130 = arith.constant 6 : index
    %c1_131 = arith.constant 1 : index
    %c0_132 = arith.constant 0 : index
    %251 = vector.load %arg2[%c0_129, %c6_130, %c1_131, %c0_132] : memref<2x16x16x26xf32, #tpu.memory_space<vmem>>, vector<2x1x15x25xf32>
    %252 = vector.shape_cast %251 : vector<2x1x15x25xf32> to vector<2x15x25xf32>
    %253 = vector.broadcast %15 : f32 to vector<2x15x25xf32>
    %254 = arith.mulf %252, %253 : vector<2x15x25xf32>
    %255 = arith.addf %250, %254 : vector<2x15x25xf32>
    %256 = vector.broadcast %13 : f32 to vector<2x15x25xf32>
    %257 = arith.mulf %252, %256 : vector<2x15x25xf32>
    %258 = arith.addf %240, %257 : vector<2x15x25xf32>
    %c0_133 = arith.constant 0 : index
    %c7_134 = arith.constant 7 : index
    %c1_135 = arith.constant 1 : index
    %c0_136 = arith.constant 0 : index
    %259 = vector.load %arg2[%c0_133, %c7_134, %c1_135, %c0_136] : memref<2x16x16x26xf32, #tpu.memory_space<vmem>>, vector<2x1x15x25xf32>
    %260 = vector.shape_cast %259 : vector<2x1x15x25xf32> to vector<2x15x25xf32>
    %261 = vector.broadcast %16 : f32 to vector<2x15x25xf32>
    %262 = arith.mulf %260, %261 : vector<2x15x25xf32>
    %263 = arith.addf %255, %262 : vector<2x15x25xf32>
    %264 = vector.broadcast %14 : f32 to vector<2x15x25xf32>
    %265 = arith.mulf %260, %264 : vector<2x15x25xf32>
    %266 = arith.addf %258, %265 : vector<2x15x25xf32>
    %c0_137 = arith.constant 0 : index
    %c4_138 = arith.constant 4 : index
    %c1_139 = arith.constant 1 : index
    %c1_140 = arith.constant 1 : index
    %267 = vector.load %arg2[%c0_137, %c4_138, %c1_139, %c1_140] : memref<2x16x16x26xf32, #tpu.memory_space<vmem>>, vector<2x1x15x25xf32>
    %268 = vector.shape_cast %267 : vector<2x1x15x25xf32> to vector<2x15x25xf32>
    %269 = vector.broadcast %15 : f32 to vector<2x15x25xf32>
    %270 = arith.mulf %268, %269 : vector<2x15x25xf32>
    %271 = arith.addf %266, %270 : vector<2x15x25xf32>
    %c0_141 = arith.constant 0 : index
    %c5_142 = arith.constant 5 : index
    %c1_143 = arith.constant 1 : index
    %c1_144 = arith.constant 1 : index
    %272 = vector.load %arg2[%c0_141, %c5_142, %c1_143, %c1_144] : memref<2x16x16x26xf32, #tpu.memory_space<vmem>>, vector<2x1x15x25xf32>
    %273 = vector.shape_cast %272 : vector<2x1x15x25xf32> to vector<2x15x25xf32>
    %274 = vector.broadcast %16 : f32 to vector<2x15x25xf32>
    %275 = arith.mulf %273, %274 : vector<2x15x25xf32>
    %276 = arith.addf %271, %275 : vector<2x15x25xf32>
    %277 = vector.broadcast %0 : f32 to vector<2x15x25xf32>
    %278 = arith.addf %179, %277 : vector<2x15x25xf32>
    %cst = arith.constant 0.000000e+00 : f32
    %279 = vector.broadcast %cst : f32 to vector<2x15x25xf32>
    %280 = arith.maximumf %278, %279 : vector<2x15x25xf32>
    %281 = vector.broadcast %0 : f32 to vector<2x15x25xf32>
    %282 = arith.addf %201, %281 : vector<2x15x25xf32>
    %cst_145 = arith.constant 0.000000e+00 : f32
    %283 = vector.broadcast %cst_145 : f32 to vector<2x15x25xf32>
    %284 = arith.maximumf %282, %283 : vector<2x15x25xf32>
    %285 = arith.maximumf %280, %284 : vector<2x15x25xf32>
    %286 = vector.broadcast %0 : f32 to vector<2x15x25xf32>
    %287 = arith.addf %263, %286 : vector<2x15x25xf32>
    %cst_146 = arith.constant 0.000000e+00 : f32
    %288 = vector.broadcast %cst_146 : f32 to vector<2x15x25xf32>
    %289 = arith.maximumf %287, %288 : vector<2x15x25xf32>
    %290 = arith.maximumf %285, %289 : vector<2x15x25xf32>
    %291 = vector.broadcast %0 : f32 to vector<2x15x25xf32>
    %292 = arith.addf %276, %291 : vector<2x15x25xf32>
    %cst_147 = arith.constant 0.000000e+00 : f32
    %293 = vector.broadcast %cst_147 : f32 to vector<2x15x25xf32>
    %294 = arith.maximumf %292, %293 : vector<2x15x25xf32>
    %295 = arith.maximumf %290, %294 : vector<2x15x25xf32>
    %cst_148 = arith.constant 0.000000e+00 : f32
    %296 = vector.broadcast %cst_148 : f32 to vector<2x384xf32>
    %c0_149 = arith.constant 0 : index
    %c0_150 = arith.constant 0 : index
    %297 = vector.load %arg6[%c0_149, %c0_150] : memref<2x384xf32, #tpu.memory_space<vmem>>, vector<2x384xf32>
    tpu.vector_store %arg6[%c0_149, %c0_150], %296 {strides = array<i32>} : memref<2x384xf32, #tpu.memory_space<vmem>>, vector<2x384xf32>,
    %298 = vector.extract_strided_slice %295 {offsets = [0, 0, 0], sizes = [2, 1, 25], strides = [1, 1, 1]} : vector<2x15x25xf32> to vector<2x1x25xf32>
    %299 = vector.shape_cast %298 : vector<2x1x25xf32> to vector<2x25xf32>
    %c0_151 = arith.constant 0 : index
    %c0_152 = arith.constant 0 : index
    %300 = vector.load %arg6[%c0_151, %c0_152] : memref<2x384xf32, #tpu.memory_space<vmem>>, vector<2x25xf32>
    tpu.vector_store %arg6[%c0_151, %c0_152], %299 {strides = array<i32>} : memref<2x384xf32, #tpu.memory_space<vmem>>, vector<2x25xf32>,
    %301 = vector.extract_strided_slice %295 {offsets = [0, 1, 0], sizes = [2, 1, 25], strides = [1, 1, 1]} : vector<2x15x25xf32> to vector<2x1x25xf32>
    %302 = vector.shape_cast %301 : vector<2x1x25xf32> to vector<2x25xf32>
    %c0_153 = arith.constant 0 : index
    %c25 = arith.constant 25 : index
    %303 = vector.load %arg6[%c0_153, %c25] : memref<2x384xf32, #tpu.memory_space<vmem>>, vector<2x25xf32>
    tpu.vector_store %arg6[%c0_153, %c25], %302 {strides = array<i32>} : memref<2x384xf32, #tpu.memory_space<vmem>>, vector<2x25xf32>,
    %304 = vector.extract_strided_slice %295 {offsets = [0, 2, 0], sizes = [2, 1, 25], strides = [1, 1, 1]} : vector<2x15x25xf32> to vector<2x1x25xf32>
    %305 = vector.shape_cast %304 : vector<2x1x25xf32> to vector<2x25xf32>
    %c0_154 = arith.constant 0 : index
    %c50 = arith.constant 50 : index
    %306 = vector.load %arg6[%c0_154, %c50] : memref<2x384xf32, #tpu.memory_space<vmem>>, vector<2x25xf32>
    tpu.vector_store %arg6[%c0_154, %c50], %305 {strides = array<i32>} : memref<2x384xf32, #tpu.memory_space<vmem>>, vector<2x25xf32>,
    %307 = vector.extract_strided_slice %295 {offsets = [0, 3, 0], sizes = [2, 1, 25], strides = [1, 1, 1]} : vector<2x15x25xf32> to vector<2x1x25xf32>
    %308 = vector.shape_cast %307 : vector<2x1x25xf32> to vector<2x25xf32>
    %c0_155 = arith.constant 0 : index
    %c75 = arith.constant 75 : index
    %309 = vector.load %arg6[%c0_155, %c75] : memref<2x384xf32, #tpu.memory_space<vmem>>, vector<2x25xf32>
    tpu.vector_store %arg6[%c0_155, %c75], %308 {strides = array<i32>} : memref<2x384xf32, #tpu.memory_space<vmem>>, vector<2x25xf32>,
    %310 = vector.extract_strided_slice %295 {offsets = [0, 4, 0], sizes = [2, 1, 25], strides = [1, 1, 1]} : vector<2x15x25xf32> to vector<2x1x25xf32>
    %311 = vector.shape_cast %310 : vector<2x1x25xf32> to vector<2x25xf32>
    %c0_156 = arith.constant 0 : index
    %c100 = arith.constant 100 : index
    %312 = vector.load %arg6[%c0_156, %c100] : memref<2x384xf32, #tpu.memory_space<vmem>>, vector<2x25xf32>
    tpu.vector_store %arg6[%c0_156, %c100], %311 {strides = array<i32>} : memref<2x384xf32, #tpu.memory_space<vmem>>, vector<2x25xf32>,
    %313 = vector.extract_strided_slice %295 {offsets = [0, 5, 0], sizes = [2, 1, 25], strides = [1, 1, 1]} : vector<2x15x25xf32> to vector<2x1x25xf32>
    %314 = vector.shape_cast %313 : vector<2x1x25xf32> to vector<2x25xf32>
    %c0_157 = arith.constant 0 : index
    %c125 = arith.constant 125 : index
    %315 = vector.load %arg6[%c0_157, %c125] : memref<2x384xf32, #tpu.memory_space<vmem>>, vector<2x25xf32>
    tpu.vector_store %arg6[%c0_157, %c125], %314 {strides = array<i32>} : memref<2x384xf32, #tpu.memory_space<vmem>>, vector<2x25xf32>,
    %316 = vector.extract_strided_slice %295 {offsets = [0, 6, 0], sizes = [2, 1, 25], strides = [1, 1, 1]} : vector<2x15x25xf32> to vector<2x1x25xf32>
    %317 = vector.shape_cast %316 : vector<2x1x25xf32> to vector<2x25xf32>
    %c0_158 = arith.constant 0 : index
    %c150 = arith.constant 150 : index
    %318 = vector.load %arg6[%c0_158, %c150] : memref<2x384xf32, #tpu.memory_space<vmem>>, vector<2x25xf32>
    tpu.vector_store %arg6[%c0_158, %c150], %317 {strides = array<i32>} : memref<2x384xf32, #tpu.memory_space<vmem>>, vector<2x25xf32>,
    %319 = vector.extract_strided_slice %295 {offsets = [0, 7, 0], sizes = [2, 1, 25], strides = [1, 1, 1]} : vector<2x15x25xf32> to vector<2x1x25xf32>
    %320 = vector.shape_cast %319 : vector<2x1x25xf32> to vector<2x25xf32>
    %c0_159 = arith.constant 0 : index
    %c175 = arith.constant 175 : index
    %321 = vector.load %arg6[%c0_159, %c175] : memref<2x384xf32, #tpu.memory_space<vmem>>, vector<2x25xf32>
    tpu.vector_store %arg6[%c0_159, %c175], %320 {strides = array<i32>} : memref<2x384xf32, #tpu.memory_space<vmem>>, vector<2x25xf32>,
    %322 = vector.extract_strided_slice %295 {offsets = [0, 8, 0], sizes = [2, 1, 25], strides = [1, 1, 1]} : vector<2x15x25xf32> to vector<2x1x25xf32>
    %323 = vector.shape_cast %322 : vector<2x1x25xf32> to vector<2x25xf32>
    %c0_160 = arith.constant 0 : index
    %c200 = arith.constant 200 : index
    %324 = vector.load %arg6[%c0_160, %c200] : memref<2x384xf32, #tpu.memory_space<vmem>>, vector<2x25xf32>
    tpu.vector_store %arg6[%c0_160, %c200], %323 {strides = array<i32>} : memref<2x384xf32, #tpu.memory_space<vmem>>, vector<2x25xf32>,
    %325 = vector.extract_strided_slice %295 {offsets = [0, 9, 0], sizes = [2, 1, 25], strides = [1, 1, 1]} : vector<2x15x25xf32> to vector<2x1x25xf32>
    %326 = vector.shape_cast %325 : vector<2x1x25xf32> to vector<2x25xf32>
    %c0_161 = arith.constant 0 : index
    %c225 = arith.constant 225 : index
    %327 = vector.load %arg6[%c0_161, %c225] : memref<2x384xf32, #tpu.memory_space<vmem>>, vector<2x25xf32>
    tpu.vector_store %arg6[%c0_161, %c225], %326 {strides = array<i32>} : memref<2x384xf32, #tpu.memory_space<vmem>>, vector<2x25xf32>,
    %328 = vector.extract_strided_slice %295 {offsets = [0, 10, 0], sizes = [2, 1, 25], strides = [1, 1, 1]} : vector<2x15x25xf32> to vector<2x1x25xf32>
    %329 = vector.shape_cast %328 : vector<2x1x25xf32> to vector<2x25xf32>
    %c0_162 = arith.constant 0 : index
    %c250 = arith.constant 250 : index
    %330 = vector.load %arg6[%c0_162, %c250] : memref<2x384xf32, #tpu.memory_space<vmem>>, vector<2x25xf32>
    tpu.vector_store %arg6[%c0_162, %c250], %329 {strides = array<i32>} : memref<2x384xf32, #tpu.memory_space<vmem>>, vector<2x25xf32>,
    %331 = vector.extract_strided_slice %295 {offsets = [0, 11, 0], sizes = [2, 1, 25], strides = [1, 1, 1]} : vector<2x15x25xf32> to vector<2x1x25xf32>
    %332 = vector.shape_cast %331 : vector<2x1x25xf32> to vector<2x25xf32>
    %c0_163 = arith.constant 0 : index
    %c275 = arith.constant 275 : index
    %333 = vector.load %arg6[%c0_163, %c275] : memref<2x384xf32, #tpu.memory_space<vmem>>, vector<2x25xf32>
    tpu.vector_store %arg6[%c0_163, %c275], %332 {strides = array<i32>} : memref<2x384xf32, #tpu.memory_space<vmem>>, vector<2x25xf32>,
    %334 = vector.extract_strided_slice %295 {offsets = [0, 12, 0], sizes = [2, 1, 25], strides = [1, 1, 1]} : vector<2x15x25xf32> to vector<2x1x25xf32>
    %335 = vector.shape_cast %334 : vector<2x1x25xf32> to vector<2x25xf32>
    %c0_164 = arith.constant 0 : index
    %c300 = arith.constant 300 : index
    %336 = vector.load %arg6[%c0_164, %c300] : memref<2x384xf32, #tpu.memory_space<vmem>>, vector<2x25xf32>
    tpu.vector_store %arg6[%c0_164, %c300], %335 {strides = array<i32>} : memref<2x384xf32, #tpu.memory_space<vmem>>, vector<2x25xf32>,
    %337 = vector.extract_strided_slice %295 {offsets = [0, 13, 0], sizes = [2, 1, 25], strides = [1, 1, 1]} : vector<2x15x25xf32> to vector<2x1x25xf32>
    %338 = vector.shape_cast %337 : vector<2x1x25xf32> to vector<2x25xf32>
    %c0_165 = arith.constant 0 : index
    %c325 = arith.constant 325 : index
    %339 = vector.load %arg6[%c0_165, %c325] : memref<2x384xf32, #tpu.memory_space<vmem>>, vector<2x25xf32>
    tpu.vector_store %arg6[%c0_165, %c325], %338 {strides = array<i32>} : memref<2x384xf32, #tpu.memory_space<vmem>>, vector<2x25xf32>,
    %340 = vector.extract_strided_slice %295 {offsets = [0, 14, 0], sizes = [2, 1, 25], strides = [1, 1, 1]} : vector<2x15x25xf32> to vector<2x1x25xf32>
    %341 = vector.shape_cast %340 : vector<2x1x25xf32> to vector<2x25xf32>
    %c0_166 = arith.constant 0 : index
    %c350 = arith.constant 350 : index
    %342 = vector.load %arg6[%c0_166, %c350] : memref<2x384xf32, #tpu.memory_space<vmem>>, vector<2x25xf32>
    tpu.vector_store %arg6[%c0_166, %c350], %341 {strides = array<i32>} : memref<2x384xf32, #tpu.memory_space<vmem>>, vector<2x25xf32>,
    %c0_167 = arith.constant 0 : index
    %c0_168 = arith.constant 0 : index
    %343 = vector.load %arg6[%c0_167, %c0_168] : memref<2x384xf32, #tpu.memory_space<vmem>>, vector<2x384xf32>
    %344 = arith.truncf %343 : vector<2x384xf32> to vector<2x384xbf16>
    %c0_169 = arith.constant 0 : index
    %c0_170 = arith.constant 0 : index
    %345 = vector.load %arg3[%c0_169, %c0_170] : memref<384x768xbf16, #tpu.memory_space<vmem>>, vector<384x768xbf16>
    %cst_171 = arith.constant dense<0.000000e+00> : vector<2x768xf32>
    %346 = tpu.matmul %344, %345, %cst_171 {dimension_numbers = #tpu.dot_dimension_numbers<[1], [0], [0], [1], [0, 0, 1, 1], [], []>} : vector<2x384xbf16>, vector<384x768xbf16>, vector<2x768xf32> -> vector<2x768xf32>
    %c0_172 = arith.constant 0 : index
    %c0_173 = arith.constant 0 : index
    %347 = vector.load %arg4[%c0_172, %c0_173] : memref<1x768xf32, #tpu.memory_space<vmem>>, vector<1x768xf32>
    %348 = vector.broadcast %347 : vector<1x768xf32> to vector<2x768xf32>
    %349 = arith.addf %346, %348 : vector<2x768xf32>
    %cst_174 = arith.constant 0.000000e+00 : f32
    %350 = vector.broadcast %cst_174 : f32 to vector<2x768xf32>
    %351 = arith.maximumf %349, %350 : vector<2x768xf32>
    %c0_175 = arith.constant 0 : index
    %c0_176 = arith.constant 0 : index
    %352 = vector.load %arg5[%c0_175, %c0_176] : memref<2x768xf32, #tpu.memory_space<vmem>>, vector<2x768xf32>
    tpu.vector_store %arg5[%c0_175, %c0_176], %351 {strides = array<i32>} : memref<2x768xf32, #tpu.memory_space<vmem>>, vector<2x768xf32>,
    return
  }
}

</mosaic_0001>

<llo_original>
// kernel: conv_technical_discussion_forward.1
$region0: #{conv_technical_discussion_forward.1}
  #allocation0 [shape = 'u32[]', space=smem, size = 0x4, offset = 0x4, fixed_abs, tag = 'smem constant byte address 0x4 - core index']
  #allocation1 [shape = 'u32[72,128]{1,0:T(1,128)}', space=vmem, size = 0x9000, scoped, tag = 'internal scratch']
  #allocation2 [shape = 'f32[2,384]{1,0:T(2,128)}', space=vmem, size = 0xc00, scoped, tag = 'scratch operand']
  #allocation3 [shape = 'f32[1]{0:T(128)S(6)}', space=smem, size = 0x200, scoped, tag = 'scoped memory for conv_technical_discussion_forward.1']
  %s0 = inlined_call_operand.vmem [shape: f32[16], index: 0, kind: input, shape index: {}]
  %s1 = inlined_call_operand.<no memory space> [shape: f32[1], index: 1, kind: input, shape index: {}]
  %s2 = inlined_call_operand.vmem [shape: f32[2,16,16,26], index: 2, kind: input, shape index: {}]
  %s3 = inlined_call_operand.vmem [shape: bf16[384,768], index: 3, kind: input, shape index: {}]
  %s4 = inlined_call_operand.vmem [shape: f32[1,768], index: 4, kind: input, shape index: {}]
  %s5 = inlined_call_operand.hbm [shape: f32[2,768], index: 5, kind: output, shape index: {}]
  %s6 = sld [smem:[#allocation0]]
  $region34: #{conv_technical_discussion_forward.1} parent=0
    _
  %s8 = ssub.s32 1, %s6
  %s9 = scalar_select 0, %s8, %s6
  %10 = sst [smem:[#allocation3]] %s1
  $region1: #{conv_technical_discussion_forward.1} parent=0
    #allocation4 [shape = 'u8[512]{0}', space=smem, size = 0x200, scoped, tag = 'input window, operand 0, single buffered']
    #allocation5 [shape = 's32[1]{0}', space=sflag, size = 0x4, scoped, tag = 'scoped memory for conv_technical_discussion_forward.1']
    #allocation6 [shape = 's32[1]{0}', space=sflag, size = 0x4, scoped, tag = 'scoped memory for conv_technical_discussion_forward.1']
    #allocation7 [shape = 'u8[6144]{0}', space=vmem, size = 0x1800, scoped, tag = 'output window, operand 0, single buffered']
    %11 = vsyncpa [#allocation6], 0
    %12 = vsyncpa [#allocation5], 0
    // Predicated region
    $region2: #{conv_technical_discussion_forward.1} parent=1 // pred_check
      _
    $region3: #{conv_technical_discussion_forward.1} parent=1 // pred_check_branch
      %14 = sbr.rel (0) target = $region5
    $region4: #{conv_technical_discussion_forward.1} parent=1 // pred_region
      %16 = vsyncadd [#allocation6], 0
      %s18 = sshll.u32 %s0, 4
      %s19 = int_to_ptr.vmem [resolvable:$true] %s18
      %21 = dma.vmem_to_smem %s19, 16, [#allocation4], [#allocation6]
    $region5: #{conv_technical_discussion_forward.1} parent=1 // pred_fallthru
      _
    // Predicated region
    $region6: #{conv_technical_discussion_forward.1} parent=1 // pred_check
      _
    $region7: #{conv_technical_discussion_forward.1} parent=1 // pred_check_branch
      %23 = sbr.rel (0) target = $region9
    $region8: #{conv_technical_discussion_forward.1} parent=1 // pred_region
      _
    $region9: #{conv_technical_discussion_forward.1} parent=1 // pred_fallthru
      _
    // Predicated region
    $region10: #{conv_technical_discussion_forward.1} parent=1 // pred_check
      _
    $region11: #{conv_technical_discussion_forward.1} parent=1 // pred_check_branch
      %25 = sbr.rel (0) target = $region13
    $region12: #{conv_technical_discussion_forward.1} parent=1 // pred_region
      _
    $region13: #{conv_technical_discussion_forward.1} parent=1 // pred_fallthru
      _
    // Predicated region
    $region14: #{conv_technical_discussion_forward.1} parent=1 // pred_check
      _
    $region15: #{conv_technical_discussion_forward.1} parent=1 // pred_check_branch
      %27 = sbr.rel (0) target = $region17
    $region16: #{conv_technical_discussion_forward.1} parent=1 // pred_region
      _
    $region17: #{conv_technical_discussion_forward.1} parent=1 // pred_fallthru
      _
    // Predicated region
    $region18: #{conv_technical_discussion_forward.1} parent=1 // pred_check
      _
    $region19: #{conv_technical_discussion_forward.1} parent=1 // pred_check_branch
      %29 = sbr.rel (0) target = $region21
    $region20: #{conv_technical_discussion_forward.1} parent=1 // pred_region
      _
    $region21: #{conv_technical_discussion_forward.1} parent=1 // pred_fallthru
      _
    // Predicated region
    $region22: #{conv_technical_discussion_forward.1} parent=1 // pred_check
      _
    $region23: #{conv_technical_discussion_forward.1} parent=1 // pred_check_branch
      %31 = sbr.rel (0) target = $region25
    $region24: #{conv_technical_discussion_forward.1} parent=1 // pred_region
      %33 = dma.done [#allocation6], 16
    $region25: #{conv_technical_discussion_forward.1} parent=1 // pred_fallthru
      _
    %34 = sfence
    %s35 = sld [smem:[#allocation3]]
    %s36 = sld [smem:[#allocation4]]
    %s37 = sld [smem:[#allocation4 + $0x1]]
    %s38 = sld [smem:[#allocation4 + $0x2]]
    %s39 = sld [smem:[#allocation4 + $0x3]]
    %s40 = sld [smem:[#allocation4 + $0x4]]
    %s41 = sld [smem:[#allocation4 + $0x5]]
    %s42 = sld [smem:[#allocation4 + $0x6]]
    %s43 = sld [smem:[#allocation4 + $0x7]]
    %s44 = sld [smem:[#allocation4 + $0x8]]
    %s45 = sld [smem:[#allocation4 + $0x9]]
    %s46 = sld [smem:[#allocation4 + $0xa]]
    %s47 = sld [smem:[#allocation4 + $0xb]]
    %s48 = sld [smem:[#allocation4 + $0xc]]
    %s49 = sld [smem:[#allocation4 + $0xd]]
    %s50 = sld [smem:[#allocation4 + $0xe]]
    %s51 = sld [smem:[#allocation4 + $0xf]]
    %v52 = vld [vmem:[%s2] sm:$0xff]
    %v53 = vld [vmem:[%s2 + $0x8] sm:$0x7f]
    %v54 = vld [vmem:[%s2 + $0x100] sm:$0xff]
    %v55 = vld [vmem:[%s2 + $0x108] sm:$0x7f]
    %v56 = vstv %s36
    %v57 = vmul.f32 %v52, %v56
    %v58 = vmul.f32 %v53, %v56
    %v59 = vmul.f32 %v54, %v56
    %v60 = vmul.f32 %v55, %v56
    %s61 = scalar_lea.vmem %s2, 16
    %v62 = vld [vmem:[%s61] sm:$0xff]
    %v63 = vld [vmem:[%s61 + $0x8] sm:$0x7f]
    %v64 = vld [vmem:[%s61 + $0x100] sm:$0xff]
    %v65 = vld [vmem:[%s61 + $0x108] sm:$0x7f]
    %v66 = vstv %s37
    %v67 = vmul.f32 %v62, %v66
    %v68 = vmul.f32 %v63, %v66
    %v69 = vmul.f32 %v64, %v66
    %v70 = vmul.f32 %v65, %v66
    %v71 = vadd.f32 %v57, %v67
    %v72 = vadd.f32 %v58, %v68
    %v73 = vadd.f32 %v59, %v69
    %v74 = vadd.f32 %v60, %v70
    %s75 = scalar_lea.vmem %s2, 32
    %v76 = vld [vmem:[%s75] sm:$0xff]
    %v77 = vld [vmem:[%s75 + $0x8] sm:$0x7f]
    %v78 = vld [vmem:[%s75 + $0x100] sm:$0xff]
    %v79 = vld [vmem:[%s75 + $0x108] sm:$0x7f]
    %v80 = vstv %s38
    %v81 = vmul.f32 %v76, %v80
    %v82 = vmul.f32 %v77, %v80
    %v83 = vmul.f32 %v78, %v80
    %v84 = vmul.f32 %v79, %v80
    %v85 = vadd.f32 %v71, %v81
    %v86 = vadd.f32 %v72, %v82
    %v87 = vadd.f32 %v73, %v83
    %v88 = vadd.f32 %v74, %v84
    %v89 = vmul.f32 %v76, %v56
    %v90 = vmul.f32 %v77, %v56
    %v91 = vmul.f32 %v78, %v56
    %v92 = vmul.f32 %v79, %v56
    %s93 = scalar_lea.vmem %s2, 48
    %v94 = vld [vmem:[%s93] sm:$0xff]
    %v95 = vld [vmem:[%s93 + $0x8] sm:$0x7f]
    %v96 = vld [vmem:[%s93 + $0x100] sm:$0xff]
    %v97 = vld [vmem:[%s93 + $0x108] sm:$0x7f]
    %v98 = vstv %s39
    %v99 = vmul.f32 %v94, %v98
    %v100 = vmul.f32 %v95, %v98
    %v101 = vmul.f32 %v96, %v98
    %v102 = vmul.f32 %v97, %v98
    %v103 = vadd.f32 %v85, %v99
    %v104 = vadd.f32 %v86, %v100
    %v105 = vadd.f32 %v87, %v101
    %v106 = vadd.f32 %v88, %v102
    %v107 = vmul.f32 %v94, %v66
    %v108 = vmul.f32 %v95, %v66
    %v109 = vmul.f32 %v96, %v66
    %v110 = vmul.f32 %v97, %v66
    %v111 = vadd.f32 %v89, %v107
    %v112 = vadd.f32 %v90, %v108
    %v113 = vadd.f32 %v91, %v109
    %v114 = vadd.f32 %v92, %v110
    %v115 = vmul.f32 %v52, %v80
    %v116 = vmul.f32 %v53, %v80
    %v117 = vmul.f32 %v54, %v80
    %v118 = vmul.f32 %v55, %v80
    %123 = vrot.lane.b32.xlu0 %v115, 127
    %v124 = vpop.permute.xlu0 %123
    %125 = vrot.lane.b32.xlu0 %v116, 127
    %v126 = vpop.permute.xlu0 %125
    %127 = vrot.lane.b32.xlu0 %v117, 127
    %v128 = vpop.permute.xlu0 %127
    %129 = vrot.lane.b32.xlu0 %v118, 127
    %v130 = vpop.permute.xlu0 %129
    %v135 = vadd.f32 %v111, %v124
    %v136 = vadd.f32 %v112, %v126
    %v137 = vadd.f32 %v113, %v128
    %v138 = vadd.f32 %v114, %v130
    %v139 = vmul.f32 %v62, %v98
    %v140 = vmul.f32 %v63, %v98
    %v141 = vmul.f32 %v64, %v98
    %v142 = vmul.f32 %v65, %v98
    %147 = vrot.lane.b32.xlu0 %v139, 127
    %v148 = vpop.permute.xlu0 %147
    %149 = vrot.lane.b32.xlu0 %v140, 127
    %v150 = vpop.permute.xlu0 %149
    %151 = vrot.lane.b32.xlu0 %v141, 127
    %v152 = vpop.permute.xlu0 %151
    %153 = vrot.lane.b32.xlu0 %v142, 127
    %v154 = vpop.permute.xlu0 %153
    %v159 = vadd.f32 %v135, %v148
    %v160 = vadd.f32 %v136, %v150
    %v161 = vadd.f32 %v137, %v152
    %v162 = vadd.f32 %v138, %v154
    %s163 = scalar_lea.vmem %s2, 64
    %v164 = vld [vmem:[%s163] sm:$0xff]
    %v165 = vld [vmem:[%s163 + $0x8] sm:$0x7f]
    %v166 = vld [vmem:[%s163 + $0x100] sm:$0xff]
    %v167 = vld [vmem:[%s163 + $0x108] sm:$0x7f]
    %v168 = vstv %s40
    %v169 = vmul.f32 %v164, %v168
    %v170 = vmul.f32 %v165, %v168
    %v171 = vmul.f32 %v166, %v168
    %v172 = vmul.f32 %v167, %v168
    %v173 = vadd.f32 %v103, %v169
    %v174 = vadd.f32 %v104, %v170
    %v175 = vadd.f32 %v105, %v171
    %v176 = vadd.f32 %v106, %v172
    %s177 = scalar_lea.vmem %s2, 80
    %v178 = vld [vmem:[%s177] sm:$0xff]
    %v179 = vld [vmem:[%s177 + $0x8] sm:$0x7f]
    %v180 = vld [vmem:[%s177 + $0x100] sm:$0xff]
    %v181 = vld [vmem:[%s177 + $0x108] sm:$0x7f]
    %v182 = vstv %s41
    %v183 = vmul.f32 %v178, %v182
    %v184 = vmul.f32 %v179, %v182
    %v185 = vmul.f32 %v180, %v182
    %v186 = vmul.f32 %v181, %v182
    %v187 = vadd.f32 %v173, %v183
    %v188 = vadd.f32 %v174, %v184
    %v189 = vadd.f32 %v175, %v185
    %v190 = vadd.f32 %v176, %v186
    %s191 = scalar_lea.vmem %s2, 96
    %v192 = vld [vmem:[%s191] sm:$0xff]
    %v193 = vld [vmem:[%s191 + $0x8] sm:$0x7f]
    %v194 = vld [vmem:[%s191 + $0x100] sm:$0xff]
    %v195 = vld [vmem:[%s191 + $0x108] sm:$0x7f]
    %v196 = vstv %s42
    %v197 = vmul.f32 %v192, %v196
    %v198 = vmul.f32 %v193, %v196
    %v199 = vmul.f32 %v194, %v196
    %v200 = vmul.f32 %v195, %v196
    %v201 = vadd.f32 %v187, %v197
    %v202 = vadd.f32 %v188, %v198
    %v203 = vadd.f32 %v189, %v199
    %v204 = vadd.f32 %v190, %v200
    %v205 = vmul.f32 %v192, %v168
    %v206 = vmul.f32 %v193, %v168
    %v207 = vmul.f32 %v194, %v168
    %v208 = vmul.f32 %v195, %v168
    %v209 = vadd.f32 %v159, %v205
    %v210 = vadd.f32 %v160, %v206
    %v211 = vadd.f32 %v161, %v207
    %v212 = vadd.f32 %v162, %v208
    %s213 = scalar_lea.vmem %s2, 112
    %v214 = vld [vmem:[%s213] sm:$0xff]
    %v215 = vld [vmem:[%s213 + $0x8] sm:$0x7f]
    %v216 = vld [vmem:[%s213 + $0x100] sm:$0xff]
    %v217 = vld [vmem:[%s213 + $0x108] sm:$0x7f]
    %v218 = vstv %s43
    %v219 = vmul.f32 %v214, %v218
    %v220 = vmul.f32 %v215, %v218
    %v221 = vmul.f32 %v216, %v218
    %v222 = vmul.f32 %v217, %v218
    %v223 = vadd.f32 %v201, %v219
    %v224 = vadd.f32 %v202, %v220
    %v225 = vadd.f32 %v203, %v221
    %v226 = vadd.f32 %v204, %v222
    %v227 = vmul.f32 %v214, %v182
    %v228 = vmul.f32 %v215, %v182
    %v229 = vmul.f32 %v216, %v182
    %v230 = vmul.f32 %v217, %v182
    %v231 = vadd.f32 %v209, %v227
    %v232 = vadd.f32 %v210, %v228
    %v233 = vadd.f32 %v211, %v229
    %v234 = vadd.f32 %v212, %v230
    %v235 = vmul.f32 %v164, %v196
    %v236 = vmul.f32 %v165, %v196
    %v237 = vmul.f32 %v166, %v196
    %v238 = vmul.f32 %v167, %v196
    %243 = vrot.lane.b32.xlu0 %v235, 127
    %v244 = vpop.permute.xlu0 %243
    %245 = vrot.lane.b32.xlu0 %v236, 127
    %v246 = vpop.permute.xlu0 %245
    %247 = vrot.lane.b32.xlu0 %v237, 127
    %v248 = vpop.permute.xlu0 %247
    %249 = vrot.lane.b32.xlu0 %v238, 127
    %v250 = vpop.permute.xlu0 %249
    %v255 = vadd.f32 %v231, %v244
    %v256 = vadd.f32 %v232, %v246
    %v257 = vadd.f32 %v233, %v248
    %v258 = vadd.f32 %v234, %v250
    %v259 = vmul.f32 %v178, %v218
    %v260 = vmul.f32 %v179, %v218
    %v261 = vmul.f32 %v180, %v218
    %v262 = vmul.f32 %v181, %v218
    %267 = vrot.lane.b32.xlu0 %v259, 127
    %v268 = vpop.permute.xlu0 %267
    %269 = vrot.lane.b32.xlu0 %v260, 127
    %v270 = vpop.permute.xlu0 %269
    %271 = vrot.lane.b32.xlu0 %v261, 127
    %v272 = vpop.permute.xlu0 %271
    %273 = vrot.lane.b32.xlu0 %v262, 127
    %v274 = vpop.permute.xlu0 %273
    %v279 = vadd.f32 %v255, %v268
    %v280 = vadd.f32 %v256, %v270
    %v281 = vadd.f32 %v257, %v272
    %v282 = vadd.f32 %v258, %v274
    %s283 = scalar_lea.vmem %s2, 128
    %v284 = vld [vmem:[%s283] sm:$0xff]
    %v285 = vld [vmem:[%s283 + $0x8] sm:$0x7f]
    %v286 = vld [vmem:[%s283 + $0x100] sm:$0xff]
    %v287 = vld [vmem:[%s283 + $0x108] sm:$0x7f]
    %v288 = vstv %s44
    %v289 = vmul.f32 %v284, %v288
    %v290 = vmul.f32 %v285, %v288
    %v291 = vmul.f32 %v286, %v288
    %v292 = vmul.f32 %v287, %v288
    %v293 = vadd.f32 %v223, %v289
    %v294 = vadd.f32 %v224, %v290
    %v295 = vadd.f32 %v225, %v291
    %v296 = vadd.f32 %v226, %v292
    %v297 = vmul.f32 %v284, %v56
    %v298 = vmul.f32 %v285, %v56
    %v299 = vmul.f32 %v286, %v56
    %v300 = vmul.f32 %v287, %v56
    %s301 = scalar_lea.vmem %s2, 144
    %v302 = vld [vmem:[%s301] sm:$0xff]
    %v303 = vld [vmem:[%s301 + $0x8] sm:$0x7f]
    %v304 = vld [vmem:[%s301 + $0x100] sm:$0xff]
    %v305 = vld [vmem:[%s301 + $0x108] sm:$0x7f]
    %v306 = vstv %s45
    %v307 = vmul.f32 %v302, %v306
    %v308 = vmul.f32 %v303, %v306
    %v309 = vmul.f32 %v304, %v306
    %v310 = vmul.f32 %v305, %v306
    %v311 = vadd.f32 %v293, %v307
    %v312 = vadd.f32 %v294, %v308
    %v313 = vadd.f32 %v295, %v309
    %v314 = vadd.f32 %v296, %v310
    %v315 = vmul.f32 %v302, %v66
    %v316 = vmul.f32 %v303, %v66
    %v317 = vmul.f32 %v304, %v66
    %v318 = vmul.f32 %v305, %v66
    %v319 = vadd.f32 %v297, %v315
    %v320 = vadd.f32 %v298, %v316
    %v321 = vadd.f32 %v299, %v317
    %v322 = vadd.f32 %v300, %v318
    %s323 = scalar_lea.vmem %s2, 160
    %v324 = vld [vmem:[%s323] sm:$0xff]
    %v325 = vld [vmem:[%s323 + $0x8] sm:$0x7f]
    %v326 = vld [vmem:[%s323 + $0x100] sm:$0xff]
    %v327 = vld [vmem:[%s323 + $0x108] sm:$0x7f]
    %v328 = vstv %s46
    %v329 = vmul.f32 %v324, %v328
    %v330 = vmul.f32 %v325, %v328
    %v331 = vmul.f32 %v326, %v328
    %v332 = vmul.f32 %v327, %v328
    %v333 = vadd.f32 %v311, %v329
    %v334 = vadd.f32 %v312, %v330
    %v335 = vadd.f32 %v313, %v331
    %v336 = vadd.f32 %v314, %v332
    %v337 = vmul.f32 %v324, %v288
    %v338 = vmul.f32 %v325, %v288
    %v339 = vmul.f32 %v326, %v288
    %v340 = vmul.f32 %v327, %v288
    %v341 = vadd.f32 %v279, %v337
    %v342 = vadd.f32 %v280, %v338
    %v343 = vadd.f32 %v281, %v339
    %v344 = vadd.f32 %v282, %v340
    %v345 = vmul.f32 %v324, %v80
    %v346 = vmul.f32 %v325, %v80
    %v347 = vmul.f32 %v326, %v80
    %v348 = vmul.f32 %v327, %v80
    %v349 = vadd.f32 %v319, %v345
    %v350 = vadd.f32 %v320, %v346
    %v351 = vadd.f32 %v321, %v347
    %v352 = vadd.f32 %v322, %v348
    %v353 = vmul.f32 %v324, %v56
    %v354 = vmul.f32 %v325, %v56
    %v355 = vmul.f32 %v326, %v56
    %v356 = vmul.f32 %v327, %v56
    %s357 = scalar_lea.vmem %s2, 176
    %v358 = vld [vmem:[%s357] sm:$0xff]
    %v359 = vld [vmem:[%s357 + $0x8] sm:$0x7f]
    %v360 = vld [vmem:[%s357 + $0x100] sm:$0xff]
    %v361 = vld [vmem:[%s357 + $0x108] sm:$0x7f]
    %v362 = vstv %s47
    %v363 = vmul.f32 %v358, %v362
    %v364 = vmul.f32 %v359, %v362
    %v365 = vmul.f32 %v360, %v362
    %v366 = vmul.f32 %v361, %v362
    %v367 = vadd.f32 %v333, %v363
    %v368 = vadd.f32 %v334, %v364
    %v369 = vadd.f32 %v335, %v365
    %v370 = vadd.f32 %v336, %v366
    %v371 = vmul.f32 %v358, %v306
    %v372 = vmul.f32 %v359, %v306
    %v373 = vmul.f32 %v360, %v306
    %v374 = vmul.f32 %v361, %v306
    %v375 = vadd.f32 %v341, %v371
    %v376 = vadd.f32 %v342, %v372
    %v377 = vadd.f32 %v343, %v373
    %v378 = vadd.f32 %v344, %v374
    %v379 = vmul.f32 %v358, %v98
    %v380 = vmul.f32 %v359, %v98
    %v381 = vmul.f32 %v360, %v98
    %v382 = vmul.f32 %v361, %v98
    %v383 = vadd.f32 %v349, %v379
    %v384 = vadd.f32 %v350, %v380
    %v385 = vadd.f32 %v351, %v381
    %v386 = vadd.f32 %v352, %v382
    %v387 = vmul.f32 %v358, %v66
    %v388 = vmul.f32 %v359, %v66
    %v389 = vmul.f32 %v360, %v66
    %v390 = vmul.f32 %v361, %v66
    %v391 = vadd.f32 %v353, %v387
    %v392 = vadd.f32 %v354, %v388
    %v393 = vadd.f32 %v355, %v389
    %v394 = vadd.f32 %v356, %v390
    %v395 = vmul.f32 %v284, %v328
    %v396 = vmul.f32 %v285, %v328
    %v397 = vmul.f32 %v286, %v328
    %v398 = vmul.f32 %v287, %v328
    %403 = vrot.lane.b32.xlu0 %v395, 127
    %v404 = vpop.permute.xlu0 %403
    %405 = vrot.lane.b32.xlu0 %v396, 127
    %v406 = vpop.permute.xlu0 %405
    %407 = vrot.lane.b32.xlu0 %v397, 127
    %v408 = vpop.permute.xlu0 %407
    %409 = vrot.lane.b32.xlu0 %v398, 127
    %v410 = vpop.permute.xlu0 %409
    %v415 = vadd.f32 %v375, %v404
    %v416 = vadd.f32 %v376, %v406
    %v417 = vadd.f32 %v377, %v408
    %v418 = vadd.f32 %v378, %v410
    %v419 = vmul.f32 %v284, %v80
    %v420 = vmul.f32 %v285, %v80
    %v421 = vmul.f32 %v286, %v80
    %v422 = vmul.f32 %v287, %v80
    %427 = vrot.lane.b32.xlu0 %v419, 127
    %v428 = vpop.permute.xlu0 %427
    %429 = vrot.lane.b32.xlu0 %v420, 127
    %v430 = vpop.permute.xlu0 %429
    %431 = vrot.lane.b32.xlu0 %v421, 127
    %v432 = vpop.permute.xlu0 %431
    %433 = vrot.lane.b32.xlu0 %v422, 127
    %v434 = vpop.permute.xlu0 %433
    %v439 = vadd.f32 %v391, %v428
    %v440 = vadd.f32 %v392, %v430
    %v441 = vadd.f32 %v393, %v432
    %v442 = vadd.f32 %v394, %v434
    %v443 = vmul.f32 %v302, %v362
    %v444 = vmul.f32 %v303, %v362
    %v445 = vmul.f32 %v304, %v362
    %v446 = vmul.f32 %v305, %v362
    %451 = vrot.lane.b32.xlu0 %v443, 127
    %v452 = vpop.permute.xlu0 %451
    %453 = vrot.lane.b32.xlu0 %v444, 127
    %v454 = vpop.permute.xlu0 %453
    %455 = vrot.lane.b32.xlu0 %v445, 127
    %v456 = vpop.permute.xlu0 %455
    %457 = vrot.lane.b32.xlu0 %v446, 127
    %v458 = vpop.permute.xlu0 %457
    %v463 = vadd.f32 %v415, %v452
    %v464 = vadd.f32 %v416, %v454
    %v465 = vadd.f32 %v417, %v456
    %v466 = vadd.f32 %v418, %v458
    %v467 = vmul.f32 %v302, %v98
    %v468 = vmul.f32 %v303, %v98
    %v469 = vmul.f32 %v304, %v98
    %v470 = vmul.f32 %v305, %v98
    %475 = vrot.lane.b32.xlu0 %v467, 127
    %v476 = vpop.permute.xlu0 %475
    %477 = vrot.lane.b32.xlu0 %v468, 127
    %v478 = vpop.permute.xlu0 %477
    %479 = vrot.lane.b32.xlu0 %v469, 127
    %v480 = vpop.permute.xlu0 %479
    %481 = vrot.lane.b32.xlu0 %v470, 127
    %v482 = vpop.permute.xlu0 %481
    %v487 = vadd.f32 %v439, %v476
    %v488 = vadd.f32 %v440, %v478
    %v489 = vadd.f32 %v441, %v480
    %v490 = vadd.f32 %v442, %v482
    %s491 = scalar_lea.vmem %s2, 192
    %v492 = vld [vmem:[%s491] sm:$0xff]
    %v493 = vld [vmem:[%s491 + $0x8] sm:$0x7f]
    %v494 = vld [vmem:[%s491 + $0x100] sm:$0xff]
    %v495 = vld [vmem:[%s491 + $0x108] sm:$0x7f]
    %v496 = vstv %s48
    %v497 = vmul.f32 %v492, %v496
    %v498 = vmul.f32 %v493, %v496
    %v499 = vmul.f32 %v494, %v496
    %v500 = vmul.f32 %v495, %v496
    %v501 = vadd.f32 %v367, %v497
    %v502 = vadd.f32 %v368, %v498
    %v503 = vadd.f32 %v369, %v499
    %v504 = vadd.f32 %v370, %v500
    %v505 = vmul.f32 %v492, %v168
    %v506 = vmul.f32 %v493, %v168
    %v507 = vmul.f32 %v494, %v168
    %v508 = vmul.f32 %v495, %v168
    %v509 = vadd.f32 %v383, %v505
    %v510 = vadd.f32 %v384, %v506
    %v511 = vadd.f32 %v385, %v507
    %v512 = vadd.f32 %v386, %v508
    %s513 = scalar_lea.vmem %s2, 208
    %v514 = vld [vmem:[%s513] sm:$0xff]
    %v515 = vld [vmem:[%s513 + $0x8] sm:$0x7f]
    %v516 = vld [vmem:[%s513 + $0x100] sm:$0xff]
    %v517 = vld [vmem:[%s513 + $0x108] sm:$0x7f]
    %v518 = vstv %s49
    %v519 = vmul.f32 %v514, %v518
    %v520 = vmul.f32 %v515, %v518
    %v521 = vmul.f32 %v516, %v518
    %v522 = vmul.f32 %v517, %v518
    %v523 = vadd.f32 %v501, %v519
    %v524 = vadd.f32 %v502, %v520
    %v525 = vadd.f32 %v503, %v521
    %v526 = vadd.f32 %v504, %v522
    %v527 = vmul.f32 %v514, %v182
    %v528 = vmul.f32 %v515, %v182
    %v529 = vmul.f32 %v516, %v182
    %v530 = vmul.f32 %v517, %v182
    %v531 = vadd.f32 %v509, %v527
    %v532 = vadd.f32 %v510, %v528
    %v533 = vadd.f32 %v511, %v529
    %v534 = vadd.f32 %v512, %v530
    %s535 = scalar_lea.vmem %s2, 224
    %v536 = vld [vmem:[%s535] sm:$0xff]
    %v537 = vld [vmem:[%s535 + $0x8] sm:$0x7f]
    %v538 = vld [vmem:[%s535 + $0x100] sm:$0xff]
    %v539 = vld [vmem:[%s535 + $0x108] sm:$0x7f]
    %v540 = vstv %s50
    %v541 = vmul.f32 %v536, %v540
    %v542 = vmul.f32 %v537, %v540
    %v543 = vmul.f32 %v538, %v540
    %v544 = vmul.f32 %v539, %v540
    %v545 = vadd.f32 %v523, %v541
    %v546 = vadd.f32 %v524, %v542
    %v547 = vadd.f32 %v525, %v543
    %v548 = vadd.f32 %v526, %v544
    %v549 = vmul.f32 %v536, %v496
    %v550 = vmul.f32 %v537, %v496
    %v551 = vmul.f32 %v538, %v496
    %v552 = vmul.f32 %v539, %v496
    %v553 = vadd.f32 %v463, %v549
    %v554 = vadd.f32 %v464, %v550
    %v555 = vadd.f32 %v465, %v551
    %v556 = vadd.f32 %v466, %v552
    %v557 = vmul.f32 %v536, %v196
    %v558 = vmul.f32 %v537, %v196
    %v559 = vmul.f32 %v538, %v196
    %v560 = vmul.f32 %v539, %v196
    %v561 = vadd.f32 %v531, %v557
    %v562 = vadd.f32 %v532, %v558
    %v563 = vadd.f32 %v533, %v559
    %v564 = vadd.f32 %v534, %v560
    %v565 = vmul.f32 %v536, %v168
    %v566 = vmul.f32 %v537, %v168
    %v567 = vmul.f32 %v538, %v168
    %v568 = vmul.f32 %v539, %v168
    %v569 = vadd.f32 %v487, %v565
    %v570 = vadd.f32 %v488, %v566
    %v571 = vadd.f32 %v489, %v567
    %v572 = vadd.f32 %v490, %v568
    %s573 = scalar_lea.vmem %s2, 240
    %v574 = vld [vmem:[%s573] sm:$0xff]
    %v575 = vld [vmem:[%s573 + $0x8] sm:$0x7f]
    %v576 = vld [vmem:[%s573 + $0x100] sm:$0xff]
    %v577 = vld [vmem:[%s573 + $0x108] sm:$0x7f]
    %v578 = vstv %s51
    %v579 = vmul.f32 %v574, %v578
    %v580 = vmul.f32 %v575, %v578
    %v581 = vmul.f32 %v576, %v578
    %v582 = vmul.f32 %v577, %v578
    %v583 = vadd.f32 %v545, %v579
    %v584 = vadd.f32 %v546, %v580
    %v585 = vadd.f32 %v547, %v581
    %v586 = vadd.f32 %v548, %v582
    %v587 = vmul.f32 %v574, %v518
    %v588 = vmul.f32 %v575, %v518
    %v589 = vmul.f32 %v576, %v518
    %v590 = vmul.f32 %v577, %v518
    %v591 = vadd.f32 %v553, %v587
    %v592 = vadd.f32 %v554, %v588
    %v593 = vadd.f32 %v555, %v589
    %v594 = vadd.f32 %v556, %v590
    %v595 = vmul.f32 %v574, %v218
    %v596 = vmul.f32 %v575, %v218
    %v597 = vmul.f32 %v576, %v218
    %v598 = vmul.f32 %v577, %v218
    %v599 = vadd.f32 %v561, %v595
    %v600 = vadd.f32 %v562, %v596
    %v601 = vadd.f32 %v563, %v597
    %v602 = vadd.f32 %v564, %v598
    %v603 = vmul.f32 %v574, %v182
    %v604 = vmul.f32 %v575, %v182
    %v605 = vmul.f32 %v576, %v182
    %v606 = vmul.f32 %v577, %v182
    %v607 = vadd.f32 %v569, %v603
    %v608 = vadd.f32 %v570, %v604
    %v609 = vadd.f32 %v571, %v605
    %v610 = vadd.f32 %v572, %v606
    %v611 = vmul.f32 %v492, %v540
    %v612 = vmul.f32 %v493, %v540
    %v613 = vmul.f32 %v494, %v540
    %v614 = vmul.f32 %v495, %v540
    %619 = vrot.lane.b32.xlu0 %v611, 127
    %v620 = vpop.permute.xlu0 %619
    %621 = vrot.lane.b32.xlu0 %v612, 127
    %v622 = vpop.permute.xlu0 %621
    %623 = vrot.lane.b32.xlu0 %v613, 127
    %v624 = vpop.permute.xlu0 %623
    %625 = vrot.lane.b32.xlu0 %v614, 127
    %v626 = vpop.permute.xlu0 %625
    %v631 = vadd.f32 %v591, %v620
    %v632 = vadd.f32 %v592, %v622
    %v633 = vadd.f32 %v593, %v624
    %v634 = vadd.f32 %v594, %v626
    %v635 = vmul.f32 %v492, %v196
    %v636 = vmul.f32 %v493, %v196
    %v637 = vmul.f32 %v494, %v196
    %v638 = vmul.f32 %v495, %v196
    %643 = vrot.lane.b32.xlu0 %v635, 127
    %v644 = vpop.permute.xlu0 %643
    %645 = vrot.lane.b32.xlu0 %v636, 127
    %v646 = vpop.permute.xlu0 %645
    %647 = vrot.lane.b32.xlu0 %v637, 127
    %v648 = vpop.permute.xlu0 %647
    %649 = vrot.lane.b32.xlu0 %v638, 127
    %v650 = vpop.permute.xlu0 %649
    %v655 = vadd.f32 %v607, %v644
    %v656 = vadd.f32 %v608, %v646
    %v657 = vadd.f32 %v609, %v648
    %v658 = vadd.f32 %v610, %v650
    %v659 = vmul.f32 %v514, %v578
    %v660 = vmul.f32 %v515, %v578
    %v661 = vmul.f32 %v516, %v578
    %v662 = vmul.f32 %v517, %v578
    %667 = vrot.lane.b32.xlu0 %v659, 127
    %v668 = vpop.permute.xlu0 %667
    %669 = vrot.lane.b32.xlu0 %v660, 127
    %v670 = vpop.permute.xlu0 %669
    %671 = vrot.lane.b32.xlu0 %v661, 127
    %v672 = vpop.permute.xlu0 %671
    %673 = vrot.lane.b32.xlu0 %v662, 127
    %v674 = vpop.permute.xlu0 %673
    %v679 = vadd.f32 %v631, %v668
    %v680 = vadd.f32 %v632, %v670
    %v681 = vadd.f32 %v633, %v672
    %v682 = vadd.f32 %v634, %v674
    %v683 = vmul.f32 %v514, %v218
    %v684 = vmul.f32 %v515, %v218
    %v685 = vmul.f32 %v516, %v218
    %v686 = vmul.f32 %v517, %v218
    %691 = vrot.lane.b32.xlu0 %v683, 127
    %v692 = vpop.permute.xlu0 %691
    %693 = vrot.lane.b32.xlu0 %v684, 127
    %v694 = vpop.permute.xlu0 %693
    %695 = vrot.lane.b32.xlu0 %v685, 127
    %v696 = vpop.permute.xlu0 %695
    %697 = vrot.lane.b32.xlu0 %v686, 127
    %v698 = vpop.permute.xlu0 %697
    %v703 = vadd.f32 %v655, %v692
    %v704 = vadd.f32 %v656, %v694
    %v705 = vadd.f32 %v657, %v696
    %v706 = vadd.f32 %v658, %v698
    %v707 = vld [vmem:[%s2 + $0x1] sm:$0xff]
    %v708 = vld [vmem:[%s2 + $0x9] sm:$0x7f]
    %v709 = vld [vmem:[%s2 + $0x101] sm:$0xff]
    %v710 = vld [vmem:[%s2 + $0x109] sm:$0x7f]
    %v711 = vmul.f32 %v707, %v288
    %v712 = vmul.f32 %v708, %v288
    %v713 = vmul.f32 %v709, %v288
    %v714 = vmul.f32 %v710, %v288
    %v715 = vadd.f32 %v599, %v711
    %v716 = vadd.f32 %v600, %v712
    %v717 = vadd.f32 %v601, %v713
    %v718 = vadd.f32 %v602, %v714
    %v719 = vld [vmem:[%s61 + $0x1] sm:$0xff]
    %v720 = vld [vmem:[%s61 + $0x9] sm:$0x7f]
    %v721 = vld [vmem:[%s61 + $0x101] sm:$0xff]
    %v722 = vld [vmem:[%s61 + $0x109] sm:$0x7f]
    %v723 = vmul.f32 %v719, %v306
    %v724 = vmul.f32 %v720, %v306
    %v725 = vmul.f32 %v721, %v306
    %v726 = vmul.f32 %v722, %v306
    %v727 = vadd.f32 %v715, %v723
    %v728 = vadd.f32 %v716, %v724
    %v729 = vadd.f32 %v717, %v725
    %v730 = vadd.f32 %v718, %v726
    %v731 = vld [vmem:[%s75 + $0x1] sm:$0xff]
    %v732 = vld [vmem:[%s75 + $0x9] sm:$0x7f]
    %v733 = vld [vmem:[%s75 + $0x101] sm:$0xff]
    %v734 = vld [vmem:[%s75 + $0x109] sm:$0x7f]
    %v735 = vmul.f32 %v731, %v328
    %v736 = vmul.f32 %v732, %v328
    %v737 = vmul.f32 %v733, %v328
    %v738 = vmul.f32 %v734, %v328
    %v739 = vadd.f32 %v727, %v735
    %v740 = vadd.f32 %v728, %v736
    %v741 = vadd.f32 %v729, %v737
    %v742 = vadd.f32 %v730, %v738
    %v743 = vmul.f32 %v731, %v288
    %v744 = vmul.f32 %v732, %v288
    %v745 = vmul.f32 %v733, %v288
    %v746 = vmul.f32 %v734, %v288
    %v747 = vadd.f32 %v703, %v743
    %v748 = vadd.f32 %v704, %v744
    %v749 = vadd.f32 %v705, %v745
    %v750 = vadd.f32 %v706, %v746
    %v751 = vld [vmem:[%s93 + $0x1] sm:$0xff]
    %v752 = vld [vmem:[%s93 + $0x9] sm:$0x7f]
    %v753 = vld [vmem:[%s93 + $0x101] sm:$0xff]
    %v754 = vld [vmem:[%s93 + $0x109] sm:$0x7f]
    %v755 = vmul.f32 %v751, %v362
    %v756 = vmul.f32 %v752, %v362
    %v757 = vmul.f32 %v753, %v362
    %v758 = vmul.f32 %v754, %v362
    %v759 = vadd.f32 %v739, %v755
    %v760 = vadd.f32 %v740, %v756
    %v761 = vadd.f32 %v741, %v757
    %v762 = vadd.f32 %v742, %v758
    %v763 = vmul.f32 %v751, %v306
    %v764 = vmul.f32 %v752, %v306
    %v765 = vmul.f32 %v753, %v306
    %v766 = vmul.f32 %v754, %v306
    %v767 = vadd.f32 %v747, %v763
    %v768 = vadd.f32 %v748, %v764
    %v769 = vadd.f32 %v749, %v765
    %v770 = vadd.f32 %v750, %v766
    %v771 = vmul.f32 %v707, %v328
    %v772 = vmul.f32 %v708, %v328
    %v773 = vmul.f32 %v709, %v328
    %v774 = vmul.f32 %v710, %v328
    %779 = vrot.lane.b32.xlu0 %v771, 127
    %v780 = vpop.permute.xlu0 %779
    %781 = vrot.lane.b32.xlu0 %v772, 127
    %v782 = vpop.permute.xlu0 %781
    %783 = vrot.lane.b32.xlu0 %v773, 127
    %v784 = vpop.permute.xlu0 %783
    %785 = vrot.lane.b32.xlu0 %v774, 127
    %v786 = vpop.permute.xlu0 %785
    %v791 = vadd.f32 %v767, %v780
    %v792 = vadd.f32 %v768, %v782
    %v793 = vadd.f32 %v769, %v784
    %v794 = vadd.f32 %v770, %v786
    %v795 = vmul.f32 %v719, %v362
    %v796 = vmul.f32 %v720, %v362
    %v797 = vmul.f32 %v721, %v362
    %v798 = vmul.f32 %v722, %v362
    %803 = vrot.lane.b32.xlu0 %v795, 127
    %v804 = vpop.permute.xlu0 %803
    %805 = vrot.lane.b32.xlu0 %v796, 127
    %v806 = vpop.permute.xlu0 %805
    %807 = vrot.lane.b32.xlu0 %v797, 127
    %v808 = vpop.permute.xlu0 %807
    %809 = vrot.lane.b32.xlu0 %v798, 127
    %v810 = vpop.permute.xlu0 %809
    %v815 = vadd.f32 %v791, %v804
    %v816 = vadd.f32 %v792, %v806
    %v817 = vadd.f32 %v793, %v808
    %v818 = vadd.f32 %v794, %v810
    %v819 = vld [vmem:[%s163 + $0x1] sm:$0xff]
    %v820 = vld [vmem:[%s163 + $0x9] sm:$0x7f]
    %v821 = vld [vmem:[%s163 + $0x101] sm:$0xff]
    %v822 = vld [vmem:[%s163 + $0x109] sm:$0x7f]
    %v823 = vmul.f32 %v819, %v496
    %v824 = vmul.f32 %v820, %v496
    %v825 = vmul.f32 %v821, %v496
    %v826 = vmul.f32 %v822, %v496
    %v827 = vadd.f32 %v759, %v823
    %v828 = vadd.f32 %v760, %v824
    %v829 = vadd.f32 %v761, %v825
    %v830 = vadd.f32 %v762, %v826
    %v831 = vld [vmem:[%s177 + $0x1] sm:$0xff]
    %v832 = vld [vmem:[%s177 + $0x9] sm:$0x7f]
    %v833 = vld [vmem:[%s177 + $0x101] sm:$0xff]
    %v834 = vld [vmem:[%s177 + $0x109] sm:$0x7f]
    %v835 = vmul.f32 %v831, %v518
    %v836 = vmul.f32 %v832, %v518
    %v837 = vmul.f32 %v833, %v518
    %v838 = vmul.f32 %v834, %v518
    %v839 = vadd.f32 %v827, %v835
    %v840 = vadd.f32 %v828, %v836
    %v841 = vadd.f32 %v829, %v837
    %v842 = vadd.f32 %v830, %v838
    %v843 = vld [vmem:[%s191 + $0x1] sm:$0xff]
    %v844 = vld [vmem:[%s191 + $0x9] sm:$0x7f]
    %v845 = vld [vmem:[%s191 + $0x101] sm:$0xff]
    %v846 = vld [vmem:[%s191 + $0x109] sm:$0x7f]
    %v847 = vmul.f32 %v843, %v540
    %v848 = vmul.f32 %v844, %v540
    %v849 = vmul.f32 %v845, %v540
    %v850 = vmul.f32 %v846, %v540
    %v851 = vadd.f32 %v839, %v847
    %v852 = vadd.f32 %v840, %v848
    %v853 = vadd.f32 %v841, %v849
    %v854 = vadd.f32 %v842, %v850
    %v855 = vmul.f32 %v843, %v496
    %v856 = vmul.f32 %v844, %v496
    %v857 = vmul.f32 %v845, %v496
    %v858 = vmul.f32 %v846, %v496
    %v859 = vadd.f32 %v815, %v855
    %v860 = vadd.f32 %v816, %v856
    %v861 = vadd.f32 %v817, %v857
    %v862 = vadd.f32 %v818, %v858
    %v863 = vld [vmem:[%s213 + $0x1] sm:$0xff]
    %v864 = vld [vmem:[%s213 + $0x9] sm:$0x7f]
    %v865 = vld [vmem:[%s213 + $0x101] sm:$0xff]
    %v866 = vld [vmem:[%s213 + $0x109] sm:$0x7f]
    %v867 = vmul.f32 %v863, %v578
    %v868 = vmul.f32 %v864, %v578
    %v869 = vmul.f32 %v865, %v578
    %v870 = vmul.f32 %v866, %v578
    %v871 = vadd.f32 %v851, %v867
    %v872 = vadd.f32 %v852, %v868
    %v873 = vadd.f32 %v853, %v869
    %v874 = vadd.f32 %v854, %v870
    %v875 = vmul.f32 %v863, %v518
    %v876 = vmul.f32 %v864, %v518
    %v877 = vmul.f32 %v865, %v518
    %v878 = vmul.f32 %v866, %v518
    %v879 = vadd.f32 %v859, %v875
    %v880 = vadd.f32 %v860, %v876
    %v881 = vadd.f32 %v861, %v877
    %v882 = vadd.f32 %v862, %v878
    %v883 = vmul.f32 %v819, %v540
    %v884 = vmul.f32 %v820, %v540
    %v885 = vmul.f32 %v821, %v540
    %v886 = vmul.f32 %v822, %v540
    %891 = vrot.lane.b32.xlu0 %v883, 127
    %v892 = vpop.permute.xlu0 %891
    %893 = vrot.lane.b32.xlu0 %v884, 127
    %v894 = vpop.permute.xlu0 %893
    %895 = vrot.lane.b32.xlu0 %v885, 127
    %v896 = vpop.permute.xlu0 %895
    %897 = vrot.lane.b32.xlu0 %v886, 127
    %v898 = vpop.permute.xlu0 %897
    %v903 = vadd.f32 %v879, %v892
    %v904 = vadd.f32 %v880, %v894
    %v905 = vadd.f32 %v881, %v896
    %v906 = vadd.f32 %v882, %v898
    %v907 = vmul.f32 %v831, %v578
    %v908 = vmul.f32 %v832, %v578
    %v909 = vmul.f32 %v833, %v578
    %v910 = vmul.f32 %v834, %v578
    %915 = vrot.lane.b32.xlu0 %v907, 127
    %v916 = vpop.permute.xlu0 %915
    %917 = vrot.lane.b32.xlu0 %v908, 127
    %v918 = vpop.permute.xlu0 %917
    %919 = vrot.lane.b32.xlu0 %v909, 127
    %v920 = vpop.permute.xlu0 %919
    %921 = vrot.lane.b32.xlu0 %v910, 127
    %v922 = vpop.permute.xlu0 %921
    %v927 = vadd.f32 %v903, %v916
    %v928 = vadd.f32 %v904, %v918
    %v929 = vadd.f32 %v905, %v920
    %v930 = vadd.f32 %v906, %v922
    %v931 = vstv %s35
    %v932 = vadd.f32 %v583, %v931
    %v933 = vadd.f32 %v584, %v931
    %v934 = vadd.f32 %v585, %v931
    %v935 = vadd.f32 %v586, %v931
    %v936 = vmax.f32 %v932, 0.0
    %v937 = vmax.f32 %v933, 0.0
    %v938 = vmax.f32 %v934, 0.0
    %v939 = vmax.f32 %v935, 0.0
    %v940 = vadd.f32 %v679, %v931
    %v941 = vadd.f32 %v680, %v931
    %v942 = vadd.f32 %v681, %v931
    %v943 = vadd.f32 %v682, %v931
    %v944 = vmax.f32 %v940, 0.0
    %v945 = vmax.f32 %v941, 0.0
    %v946 = vmax.f32 %v942, 0.0
    %v947 = vmax.f32 %v943, 0.0
    %v948 = vmax.f32 %v936, %v944
    %v949 = vmax.f32 %v937, %v945
    %v950 = vmax.f32 %v938, %v946
    %v951 = vmax.f32 %v939, %v947
    %v952 = vadd.f32 %v871, %v931
    %v953 = vadd.f32 %v872, %v931
    %v954 = vadd.f32 %v873, %v931
    %v955 = vadd.f32 %v874, %v931
    %v956 = vmax.f32 %v952, 0.0
    %v957 = vmax.f32 %v953, 0.0
    %v958 = vmax.f32 %v954, 0.0
    %v959 = vmax.f32 %v955, 0.0
    %v960 = vmax.f32 %v948, %v956
    %v961 = vmax.f32 %v949, %v957
    %v962 = vmax.f32 %v950, %v958
    %v963 = vmax.f32 %v951, %v959
    %v964 = vadd.f32 %v927, %v931
    %v965 = vadd.f32 %v928, %v931
    %v966 = vadd.f32 %v929, %v931
    %v967 = vadd.f32 %v930, %v931
    %v968 = vmax.f32 %v964, 0.0
    %v969 = vmax.f32 %v965, 0.0
    %v970 = vmax.f32 %v966, 0.0
    %v971 = vmax.f32 %v967, 0.0
    %v972 = vmax.f32 %v960, %v968
    %v973 = vmax.f32 %v961, %v969
    %v974 = vmax.f32 %v962, %v970
    %v975 = vmax.f32 %v963, %v971
    %976 = vst [vmem:[#allocation2] sm:$0x3f] 0.0
    %vm979 = vcmask 1044484
    %v980 = vsel %vm979, %v972, %v972
    %vm981 = vcmask 1046534
    %v982 = vsel %vm981, %v972, %v980
    %v983 = vrot.slane %v974, 7
    %vm984 = vcmask 1041409
    %v985 = vsel %vm984, %v983, %v982
    %vm986 = vcmask 1043459
    %v987 = vsel %vm986, %v983, %v985
    %vm988 = vcmask 1045509
    %v989 = vsel %vm988, %v983, %v987
    %vm990 = vcmask 1047559
    %v991 = vsel %vm990, %v983, %v989
    %vm993 = vcmask 197632
    %994 = vst.msk [vmem:[#allocation2] sm:$0x3] %vm993, %v991
    %v995 = vrot.slane %v972, 1
    %v996 = vsel %vm979, %v995, %v995
    %v997 = vsel %vm981, %v995, %v996
    %v998 = vsel %vm984, %v974, %v997
    %v999 = vsel %vm986, %v974, %v998
    %v1000 = vsel %vm988, %v974, %v999
    %v1001 = vsel %vm990, %v974, %v1000
    %1002 = vrot.lane.b32.xlu0 %v1001, 25
    %v1003 = vpop.permute.xlu0 %1002
    %vm1005 = vcmask 402632
    %1006 = vst.msk [vmem:[#allocation2] sm:$0x3] %vm1005, %v1003
    %1007 = vst.sshfl [vmem:[#allocation1] sm:$0xff pattern:$0x73625140] %v972
    %s1008 = scalar_lea.vmem [#allocation1], 1
    %v1009 = vld [vmem:[%s1008] ss:$4 sm:$0xff]
    %1010 = vst.sshfl [vmem:[#allocation1 + $0x20] sm:$0xff pattern:$0x73625140] %v974
    %s1011 = scalar_lea.vmem [#allocation1], 33
    %v1012 = vld [vmem:[%s1011] ss:$4 sm:$0xff]
    %v1013 = vsel %vm979, %v1009, %v1009
    %v1014 = vsel %vm981, %v1009, %v1013
    %v1015 = vrot.slane %v1012, 7
    %v1016 = vsel %vm984, %v1015, %v1014
    %v1017 = vsel %vm986, %v1015, %v1016
    %v1018 = vsel %vm988, %v1015, %v1017
    %v1019 = vsel %vm990, %v1015, %v1018
    %1020 = vrot.lane.b32.xlu0 %v1019, 50
    %v1021 = vpop.permute.xlu0 %1020
    %vm1023 = vcmask 607632
    %1024 = vst.msk [vmem:[#allocation2] sm:$0x3] %vm1023, %v1021
    %1025 = vst.sshfl [vmem:[#allocation1] sm:$0xff pattern:$0x73625140] %v972
    %s1026 = scalar_lea.vmem [#allocation1], 1
    %v1027 = vld [vmem:[%s1026] ss:$4 sm:$0xff]
    %1028 = vst.sshfl [vmem:[#allocation1 + $0x20] sm:$0xff pattern:$0x73625140] %v974
    %s1029 = scalar_lea.vmem [#allocation1], 33
    %v1030 = vld [vmem:[%s1029] ss:$4 sm:$0xff]
    %v1031 = vrot.slane %v1027, 1
    %v1032 = vsel %vm979, %v1031, %v1031
    %v1033 = vsel %vm981, %v1031, %v1032
    %v1034 = vsel %vm984, %v1030, %v1033
    %v1035 = vsel %vm986, %v1030, %v1034
    %v1036 = vsel %vm988, %v1030, %v1035
    %v1037 = vsel %vm990, %v1030, %v1036
    %1038 = vrot.lane.b32.xlu0 %v1037, 75
    %v1039 = vpop.permute.xlu0 %1038
    %vm1041 = vcmask 812632
    %1042 = vst.msk [vmem:[#allocation2] sm:$0x3] %vm1041, %v1039
    %1043 = vst.sshfl [vmem:[#allocation1] sm:$0xff pattern:$0x73625140] %v972
    %s1044 = scalar_lea.vmem [#allocation1], 2
    %v1045 = vld [vmem:[%s1044] ss:$4 sm:$0xff]
    %1046 = vst.sshfl [vmem:[#allocation1 + $0x20] sm:$0xff pattern:$0x73625140] %v974
    %s1047 = scalar_lea.vmem [#allocation1], 34
    %v1048 = vld [vmem:[%s1047] ss:$4 sm:$0xff]
    %v1049 = vsel %vm979, %v1045, %v1045
    %v1050 = vsel %vm981, %v1045, %v1049
    %v1051 = vrot.slane %v1048, 7
    %v1052 = vsel %vm984, %v1051, %v1050
    %v1053 = vsel %vm986, %v1051, %v1052
    %v1054 = vsel %vm988, %v1051, %v1053
    %v1055 = vsel %vm990, %v1051, %v1054
    %1056 = vrot.lane.b32.xlu0 %v1055, 100
    %v1057 = vpop.permute.xlu0 %1056
    %vm1059 = vcmask 1017632
    %1060 = vst.msk [vmem:[#allocation2] sm:$0x3] %vm1059, %v1057
    %1061 = vst.sshfl [vmem:[#allocation1] sm:$0xff pattern:$0x73625140] %v972
    %s1062 = scalar_lea.vmem [#allocation1], 2
    %v1063 = vld [vmem:[%s1062] ss:$4 sm:$0xff]
    %1064 = vst.sshfl [vmem:[#allocation1 + $0x20] sm:$0xff pattern:$0x73625140] %v974
    %s1065 = scalar_lea.vmem [#allocation1], 34
    %v1066 = vld [vmem:[%s1065] ss:$4 sm:$0xff]
    %v1067 = vrot.slane %v1063, 1
    %v1068 = vsel %vm979, %v1067, %v1067
    %v1069 = vsel %vm981, %v1067, %v1068
    %v1070 = vsel %vm984, %v1066, %v1069
    %v1071 = vsel %vm986, %v1066, %v1070
    %v1072 = vsel %vm988, %v1066, %v1071
    %v1073 = vsel %vm990, %v1066, %v1072
    %1074 = vrot.lane.b32.xlu0 %v1073, 125
    %v1075 = vpop.permute.xlu0 %1074
    %v1076 = vrot.slane %v1075, 6
    %vm1077 = vcmask 1022976
    %v1078 = vsel %vm1077, %v1076, %v1075
    %vm1080 = vcmask 1042408
    %vm1081 = vcmask 175106
    %vm1082 = vmor %vm1081, %vm1080
    %1083 = vst.msk [vmem:[#allocation2] sm:$0xf] %vm1082, %v1078
    %1084 = vst.sshfl [vmem:[#allocation1] sm:$0xff pattern:$0x73625140] %v972
    %s1085 = scalar_lea.vmem [#allocation1], 3
    %v1086 = vld [vmem:[%s1085] ss:$4 sm:$0xff]
    %1087 = vst.sshfl [vmem:[#allocation1 + $0x20] sm:$0xff pattern:$0x73625140] %v974
    %s1088 = scalar_lea.vmem [#allocation1], 35
    %v1089 = vld [vmem:[%s1088] ss:$4 sm:$0xff]
    %v1090 = vsel %vm979, %v1086, %v1086
    %v1091 = vsel %vm981, %v1086, %v1090
    %v1092 = vrot.slane %v1089, 7
    %v1093 = vsel %vm984, %v1092, %v1091
    %v1094 = vsel %vm986, %v1092, %v1093
    %v1095 = vsel %vm988, %v1092, %v1094
    %v1096 = vsel %vm990, %v1092, %v1095
    %1097 = vrot.lane.b32.xlu0 %v1096, 22
    %v1098 = vpop.permute.xlu0 %1097
    %vm1100 = vcmask 378032
    %1101 = vst.msk [vmem:[#allocation2 + $0x2] sm:$0x3] %vm1100, %v1098
    %1102 = vst.sshfl [vmem:[#allocation1] sm:$0xff pattern:$0x73625140] %v972
    %s1103 = scalar_lea.vmem [#allocation1], 3
    %v1104 = vld [vmem:[%s1103] ss:$4 sm:$0xff]
    %1105 = vst.sshfl [vmem:[#allocation1 + $0x20] sm:$0xff pattern:$0x73625140] %v974
    %s1106 = scalar_lea.vmem [#allocation1], 35
    %v1107 = vld [vmem:[%s1106] ss:$4 sm:$0xff]
    %v1108 = vrot.slane %v1104, 1
    %v1109 = vsel %vm979, %v1108, %v1108
    %v1110 = vsel %vm981, %v1108, %v1109
    %v1111 = vsel %vm984, %v1107, %v1110
    %v1112 = vsel %vm986, %v1107, %v1111
    %v1113 = vsel %vm988, %v1107, %v1112
    %v1114 = vsel %vm990, %v1107, %v1113
    %1115 = vrot.lane.b32.xlu0 %v1114, 47
    %v1116 = vpop.permute.xlu0 %1115
    %vm1118 = vcmask 583032
    %1119 = vst.msk [vmem:[#allocation2 + $0x2] sm:$0x3] %vm1118, %v1116
    %v1122 = vsel %vm979, %v973, %v973
    %v1123 = vsel %vm981, %v973, %v1122
    %v1124 = vrot.slane %v975, 7
    %v1125 = vsel %vm984, %v1124, %v1123
    %v1126 = vsel %vm986, %v1124, %v1125
    %v1127 = vsel %vm988, %v1124, %v1126
    %v1128 = vsel %vm990, %v1124, %v1127
    %1129 = vrot.lane.b32.xlu0 %v1128, 72
    %v1130 = vpop.permute.xlu0 %1129
    %vm1132 = vcmask 788032
    %1133 = vst.msk [vmem:[#allocation2 + $0x2] sm:$0x3] %vm1132, %v1130
    %v1134 = vrot.slane %v973, 1
    %v1135 = vsel %vm979, %v1134, %v1134
    %v1136 = vsel %vm981, %v1134, %v1135
    %v1137 = vsel %vm984, %v975, %v1136
    %v1138 = vsel %vm986, %v975, %v1137
    %v1139 = vsel %vm988, %v975, %v1138
    %v1140 = vsel %vm990, %v975, %v1139
    %1141 = vrot.lane.b32.xlu0 %v1140, 97
    %v1142 = vpop.permute.xlu0 %1141
    %vm1144 = vcmask 993032
    %1145 = vst.msk [vmem:[#allocation2 + $0x2] sm:$0x3] %vm1144, %v1142
    %1146 = vst.sshfl [vmem:[#allocation1] sm:$0xff pattern:$0x73625140] %v973
    %s1147 = scalar_lea.vmem [#allocation1], 1
    %v1148 = vld [vmem:[%s1147] ss:$4 sm:$0xff]
    %1149 = vst.sshfl [vmem:[#allocation1 + $0x20] sm:$0xff pattern:$0x73625140] %v975
    %s1150 = scalar_lea.vmem [#allocation1], 33
    %v1151 = vld [vmem:[%s1150] ss:$4 sm:$0xff]
    %v1152 = vsel %vm979, %v1148, %v1148
    %v1153 = vsel %vm981, %v1148, %v1152
    %v1154 = vrot.slane %v1151, 7
    %v1155 = vsel %vm984, %v1154, %v1153
    %v1156 = vsel %vm986, %v1154, %v1155
    %v1157 = vsel %vm988, %v1154, %v1156
    %v1158 = vsel %vm990, %v1154, %v1157
    %1159 = vrot.lane.b32.xlu0 %v1158, 122
    %v1160 = vpop.permute.xlu0 %1159
    %v1161 = vrot.slane %v1160, 6
    %vm1162 = vcmask 998400
    %v1163 = vsel %vm1162, %v1161, %v1160
    %vm1165 = vcmask 1042384
    %vm1166 = vcmask 150530
    %vm1167 = vmor %vm1166, %vm1165
    %1168 = vst.msk [vmem:[#allocation2 + $0x2] sm:$0xf] %vm1167, %v1163
    %1169 = vst.sshfl [vmem:[#allocation1] sm:$0xff pattern:$0x73625140] %v973
    %s1170 = scalar_lea.vmem [#allocation1], 1
    %v1171 = vld [vmem:[%s1170] ss:$4 sm:$0xff]
    %1172 = vst.sshfl [vmem:[#allocation1 + $0x20] sm:$0xff pattern:$0x73625140] %v975
    %s1173 = scalar_lea.vmem [#allocation1], 33
    %v1174 = vld [vmem:[%s1173] ss:$4 sm:$0xff]
    %v1175 = vrot.slane %v1171, 1
    %v1176 = vsel %vm979, %v1175, %v1175
    %v1177 = vsel %vm981, %v1175, %v1176
    %v1178 = vsel %vm984, %v1174, %v1177
    %v1179 = vsel %vm986, %v1174, %v1178
    %v1180 = vsel %vm988, %v1174, %v1179
    %v1181 = vsel %vm990, %v1174, %v1180
    %1182 = vrot.lane.b32.xlu0 %v1181, 19
    %v1183 = vpop.permute.xlu0 %1182
    %vm1185 = vcmask 353432
    %1186 = vst.msk [vmem:[#allocation2 + $0x4] sm:$0x3] %vm1185, %v1183
    %1187 = vst.sshfl [vmem:[#allocation1] sm:$0xff pattern:$0x73625140] %v973
    %s1188 = scalar_lea.vmem [#allocation1], 2
    %v1189 = vld [vmem:[%s1188] ss:$4 sm:$0xff]
    %1190 = vst.sshfl [vmem:[#allocation1 + $0x20] sm:$0xff pattern:$0x73625140] %v975
    %s1191 = scalar_lea.vmem [#allocation1], 34
    %v1192 = vld [vmem:[%s1191] ss:$4 sm:$0xff]
    %v1193 = vsel %vm979, %v1189, %v1189
    %v1194 = vsel %vm981, %v1189, %v1193
    %v1195 = vrot.slane %v1192, 7
    %v1196 = vsel %vm984, %v1195, %v1194
    %v1197 = vsel %vm986, %v1195, %v1196
    %v1198 = vsel %vm988, %v1195, %v1197
    %v1199 = vsel %vm990, %v1195, %v1198
    %1200 = vrot.lane.b32.xlu0 %v1199, 44
    %v1201 = vpop.permute.xlu0 %1200
    %vm1203 = vcmask 558432
    %1204 = vst.msk [vmem:[#allocation2 + $0x4] sm:$0x3] %vm1203, %v1201
    %1205 = vst.sshfl [vmem:[#allocation1] sm:$0xff pattern:$0x73625140] %v973
    %s1206 = scalar_lea.vmem [#allocation1], 2
    %v1207 = vld [vmem:[%s1206] ss:$4 sm:$0xff]
    %1208 = vst.sshfl [vmem:[#allocation1 + $0x20] sm:$0xff pattern:$0x73625140] %v975
    %s1209 = scalar_lea.vmem [#allocation1], 34
    %v1210 = vld [vmem:[%s1209] ss:$4 sm:$0xff]
    %v1211 = vrot.slane %v1207, 1
    %v1212 = vsel %vm979, %v1211, %v1211
    %v1213 = vsel %vm981, %v1211, %v1212
    %v1214 = vsel %vm984, %v1210, %v1213
    %v1215 = vsel %vm986, %v1210, %v1214
    %v1216 = vsel %vm988, %v1210, %v1215
    %v1217 = vsel %vm990, %v1210, %v1216
    %1218 = vrot.lane.b32.xlu0 %v1217, 69
    %v1219 = vpop.permute.xlu0 %1218
    %vm1221 = vcmask 763432
    %1222 = vst.msk [vmem:[#allocation2 + $0x4] sm:$0x3] %vm1221, %v1219
    %1223 = vst.sshfl [vmem:[#allocation1] sm:$0xff pattern:$0x73625140] %v973
    %s1224 = scalar_lea.vmem [#allocation1], 3
    %v1225 = vld [vmem:[%s1224] ss:$4 sm:$0xff]
    %1226 = vst.sshfl [vmem:[#allocation1 + $0x20] sm:$0xff pattern:$0x73625140] %v975
    %s1227 = scalar_lea.vmem [#allocation1], 35
    %v1228 = vld [vmem:[%s1227] ss:$4 sm:$0xff]
    %v1229 = vsel %vm979, %v1225, %v1225
    %v1230 = vsel %vm981, %v1225, %v1229
    %v1231 = vrot.slane %v1228, 7
    %v1232 = vsel %vm984, %v1231, %v1230
    %v1233 = vsel %vm986, %v1231, %v1232
    %v1234 = vsel %vm988, %v1231, %v1233
    %v1235 = vsel %vm990, %v1231, %v1234
    %1236 = vrot.lane.b32.xlu0 %v1235, 94
    %v1237 = vpop.permute.xlu0 %1236
    %vm1239 = vcmask 968432
    %1240 = vst.msk [vmem:[#allocation2 + $0x4] sm:$0x3] %vm1239, %v1237
    %v1241 = vld [vmem:[#allocation2] sm:$0x3f]
    %1243 = vst [vmem:[#allocation1] ss:$4 sm:$0xff] %v1241
    %v1244 = vld.sshfl [vmem:[#allocation1] sm:$0xff pattern:$0x73625140]
    %v1245 = vld.sshfl [vmem:[#allocation1 + $0x8] sm:$0xff pattern:$0x73625140]
    %v1246 = vld.sshfl [vmem:[#allocation1 + $0x10] sm:$0xff pattern:$0x73625140]
    %v1250 = vpack.c.bf16 %v1244, %v1244
    %v1251 = vpack.c.bf16 %v1245, %v1245
    %v1252 = vpack.c.bf16 %v1246, %v1246
    %v1253 = vld [vmem:[%s3] sm:$0xff]
    %v1254 = vld [vmem:[%s3 + $0x8] sm:$0xff]
    %v1255 = vld [vmem:[%s3 + $0x10] sm:$0xff]
    %v1256 = vld [vmem:[%s3 + $0x18] sm:$0xff]
    %v1257 = vld [vmem:[%s3 + $0x20] sm:$0xff]
    %v1258 = vld [vmem:[%s3 + $0x28] sm:$0xff]
    %v1259 = vld [vmem:[%s3 + $0x30] sm:$0xff]
    %v1260 = vld [vmem:[%s3 + $0x38] sm:$0xff]
    %v1261 = vld [vmem:[%s3 + $0x40] sm:$0xff]
    %v1262 = vld [vmem:[%s3 + $0x48] sm:$0xff]
    %v1263 = vld [vmem:[%s3 + $0x50] sm:$0xff]
    %v1264 = vld [vmem:[%s3 + $0x58] sm:$0xff]
    %v1265 = vld [vmem:[%s3 + $0x60] sm:$0xff]
    %v1266 = vld [vmem:[%s3 + $0x68] sm:$0xff]
    %v1267 = vld [vmem:[%s3 + $0x70] sm:$0xff]
    %v1268 = vld [vmem:[%s3 + $0x78] sm:$0xff]
    %v1269 = vld [vmem:[%s3 + $0x80] sm:$0xff]
    %v1270 = vld [vmem:[%s3 + $0x88] sm:$0xff]
    %v1271 = vld [vmem:[%s3 + $0x90] sm:$0xff]
    %v1272 = vld [vmem:[%s3 + $0x98] sm:$0xff]
    %v1273 = vld [vmem:[%s3 + $0xa0] sm:$0xff]
    %v1274 = vld [vmem:[%s3 + $0xa8] sm:$0xff]
    %v1275 = vld [vmem:[%s3 + $0xb0] sm:$0xff]
    %v1276 = vld [vmem:[%s3 + $0xb8] sm:$0xff]
    %v1277 = vld [vmem:[%s3 + $0xc0] sm:$0xff]
    %v1278 = vld [vmem:[%s3 + $0xc8] sm:$0xff]
    %v1279 = vld [vmem:[%s3 + $0xd0] sm:$0xff]
    %v1280 = vld [vmem:[%s3 + $0xd8] sm:$0xff]
    %v1281 = vld [vmem:[%s3 + $0xe0] sm:$0xff]
    %v1282 = vld [vmem:[%s3 + $0xe8] sm:$0xff]
    %v1283 = vld [vmem:[%s3 + $0xf0] sm:$0xff]
    %v1284 = vld [vmem:[%s3 + $0xf8] sm:$0xff]
    %v1285 = vld [vmem:[%s3 + $0x100] sm:$0xff]
    %v1286 = vld [vmem:[%s3 + $0x108] sm:$0xff]
    %v1287 = vld [vmem:[%s3 + $0x110] sm:$0xff]
    %v1288 = vld [vmem:[%s3 + $0x118] sm:$0xff]
    %v1289 = vld [vmem:[%s3 + $0x120] sm:$0xff]
    %v1290 = vld [vmem:[%s3 + $0x128] sm:$0xff]
    %v1291 = vld [vmem:[%s3 + $0x130] sm:$0xff]
    %v1292 = vld [vmem:[%s3 + $0x138] sm:$0xff]
    %v1293 = vld [vmem:[%s3 + $0x140] sm:$0xff]
    %v1294 = vld [vmem:[%s3 + $0x148] sm:$0xff]
    %v1295 = vld [vmem:[%s3 + $0x150] sm:$0xff]
    %v1296 = vld [vmem:[%s3 + $0x158] sm:$0xff]
    %v1297 = vld [vmem:[%s3 + $0x160] sm:$0xff]
    %v1298 = vld [vmem:[%s3 + $0x168] sm:$0xff]
    %v1299 = vld [vmem:[%s3 + $0x170] sm:$0xff]
    %v1300 = vld [vmem:[%s3 + $0x178] sm:$0xff]
    %v1301 = vld [vmem:[%s3 + $0x180] sm:$0xff]
    %v1302 = vld [vmem:[%s3 + $0x188] sm:$0xff]
    %v1303 = vld [vmem:[%s3 + $0x190] sm:$0xff]
    %v1304 = vld [vmem:[%s3 + $0x198] sm:$0xff]
    %v1305 = vld [vmem:[%s3 + $0x1a0] sm:$0xff]
    %v1306 = vld [vmem:[%s3 + $0x1a8] sm:$0xff]
    %v1307 = vld [vmem:[%s3 + $0x1b0] sm:$0xff]
    %v1308 = vld [vmem:[%s3 + $0x1b8] sm:$0xff]
    %v1309 = vld [vmem:[%s3 + $0x1c0] sm:$0xff]
    %v1310 = vld [vmem:[%s3 + $0x1c8] sm:$0xff]
    %v1311 = vld [vmem:[%s3 + $0x1d0] sm:$0xff]
    %v1312 = vld [vmem:[%s3 + $0x1d8] sm:$0xff]
    %v1313 = vld [vmem:[%s3 + $0x1e0] sm:$0xff]
    %v1314 = vld [vmem:[%s3 + $0x1e8] sm:$0xff]
    %v1315 = vld [vmem:[%s3 + $0x1f0] sm:$0xff]
    %v1316 = vld [vmem:[%s3 + $0x1f8] sm:$0xff]
    %v1317 = vld [vmem:[%s3 + $0x200] sm:$0xff]
    %v1318 = vld [vmem:[%s3 + $0x208] sm:$0xff]
    %v1319 = vld [vmem:[%s3 + $0x210] sm:$0xff]
    %v1320 = vld [vmem:[%s3 + $0x218] sm:$0xff]
    %v1321 = vld [vmem:[%s3 + $0x220] sm:$0xff]
    %v1322 = vld [vmem:[%s3 + $0x228] sm:$0xff]
    %v1323 = vld [vmem:[%s3 + $0x230] sm:$0xff]
    %v1324 = vld [vmem:[%s3 + $0x238] sm:$0xff]
    %v1325 = vld [vmem:[%s3 + $0x240] sm:$0xff]
    %v1326 = vld [vmem:[%s3 + $0x248] sm:$0xff]
    %v1327 = vld [vmem:[%s3 + $0x250] sm:$0xff]
    %v1328 = vld [vmem:[%s3 + $0x258] sm:$0xff]
    %v1329 = vld [vmem:[%s3 + $0x260] sm:$0xff]
    %v1330 = vld [vmem:[%s3 + $0x268] sm:$0xff]
    %v1331 = vld [vmem:[%s3 + $0x270] sm:$0xff]
    %v1332 = vld [vmem:[%s3 + $0x278] sm:$0xff]
    %v1333 = vld [vmem:[%s3 + $0x280] sm:$0xff]
    %v1334 = vld [vmem:[%s3 + $0x288] sm:$0xff]
    %v1335 = vld [vmem:[%s3 + $0x290] sm:$0xff]
    %v1336 = vld [vmem:[%s3 + $0x298] sm:$0xff]
    %v1337 = vld [vmem:[%s3 + $0x2a0] sm:$0xff]
    %v1338 = vld [vmem:[%s3 + $0x2a8] sm:$0xff]
    %v1339 = vld [vmem:[%s3 + $0x2b0] sm:$0xff]
    %v1340 = vld [vmem:[%s3 + $0x2b8] sm:$0xff]
    %v1341 = vld [vmem:[%s3 + $0x2c0] sm:$0xff]
    %v1342 = vld [vmem:[%s3 + $0x2c8] sm:$0xff]
    %v1343 = vld [vmem:[%s3 + $0x2d0] sm:$0xff]
    %v1344 = vld [vmem:[%s3 + $0x2d8] sm:$0xff]
    %v1345 = vld [vmem:[%s3 + $0x2e0] sm:$0xff]
    %v1346 = vld [vmem:[%s3 + $0x2e8] sm:$0xff]
    %v1347 = vld [vmem:[%s3 + $0x2f0] sm:$0xff]
    %v1348 = vld [vmem:[%s3 + $0x2f8] sm:$0xff]
    %v1349 = vld [vmem:[%s3 + $0x300] sm:$0xff]
    %v1350 = vld [vmem:[%s3 + $0x308] sm:$0xff]
    %v1351 = vld [vmem:[%s3 + $0x310] sm:$0xff]
    %v1352 = vld [vmem:[%s3 + $0x318] sm:$0xff]
    %v1353 = vld [vmem:[%s3 + $0x320] sm:$0xff]
    %v1354 = vld [vmem:[%s3 + $0x328] sm:$0xff]
    %v1355 = vld [vmem:[%s3 + $0x330] sm:$0xff]
    %v1356 = vld [vmem:[%s3 + $0x338] sm:$0xff]
    %v1357 = vld [vmem:[%s3 + $0x340] sm:$0xff]
    %v1358 = vld [vmem:[%s3 + $0x348] sm:$0xff]
    %v1359 = vld [vmem:[%s3 + $0x350] sm:$0xff]
    %v1360 = vld [vmem:[%s3 + $0x358] sm:$0xff]
    %v1361 = vld [vmem:[%s3 + $0x360] sm:$0xff]
    %v1362 = vld [vmem:[%s3 + $0x368] sm:$0xff]
    %v1363 = vld [vmem:[%s3 + $0x370] sm:$0xff]
    %v1364 = vld [vmem:[%s3 + $0x378] sm:$0xff]
    %v1365 = vld [vmem:[%s3 + $0x380] sm:$0xff]
    %v1366 = vld [vmem:[%s3 + $0x388] sm:$0xff]
    %v1367 = vld [vmem:[%s3 + $0x390] sm:$0xff]
    %v1368 = vld [vmem:[%s3 + $0x398] sm:$0xff]
    %v1369 = vld [vmem:[%s3 + $0x3a0] sm:$0xff]
    %v1370 = vld [vmem:[%s3 + $0x3a8] sm:$0xff]
    %v1371 = vld [vmem:[%s3 + $0x3b0] sm:$0xff]
    %v1372 = vld [vmem:[%s3 + $0x3b8] sm:$0xff]
    %v1373 = vld [vmem:[%s3 + $0x3c0] sm:$0xff]
    %v1374 = vld [vmem:[%s3 + $0x3c8] sm:$0xff]
    %v1375 = vld [vmem:[%s3 + $0x3d0] sm:$0xff]
    %v1376 = vld [vmem:[%s3 + $0x3d8] sm:$0xff]
    %v1377 = vld [vmem:[%s3 + $0x3e0] sm:$0xff]
    %v1378 = vld [vmem:[%s3 + $0x3e8] sm:$0xff]
    %v1379 = vld [vmem:[%s3 + $0x3f0] sm:$0xff]
    %v1380 = vld [vmem:[%s3 + $0x3f8] sm:$0xff]
    %v1381 = vld [vmem:[%s3 + $0x400] sm:$0xff]
    %v1382 = vld [vmem:[%s3 + $0x408] sm:$0xff]
    %v1383 = vld [vmem:[%s3 + $0x410] sm:$0xff]
    %v1384 = vld [vmem:[%s3 + $0x418] sm:$0xff]
    %v1385 = vld [vmem:[%s3 + $0x420] sm:$0xff]
    %v1386 = vld [vmem:[%s3 + $0x428] sm:$0xff]
    %v1387 = vld [vmem:[%s3 + $0x430] sm:$0xff]
    %v1388 = vld [vmem:[%s3 + $0x438] sm:$0xff]
    %v1389 = vld [vmem:[%s3 + $0x440] sm:$0xff]
    %v1390 = vld [vmem:[%s3 + $0x448] sm:$0xff]
    %v1391 = vld [vmem:[%s3 + $0x450] sm:$0xff]
    %v1392 = vld [vmem:[%s3 + $0x458] sm:$0xff]
    %v1393 = vld [vmem:[%s3 + $0x460] sm:$0xff]
    %v1394 = vld [vmem:[%s3 + $0x468] sm:$0xff]
    %v1395 = vld [vmem:[%s3 + $0x470] sm:$0xff]
    %v1396 = vld [vmem:[%s3 + $0x478] sm:$0xff]
    %v1397 = vld [vmem:[%s4] sm:$0x3f]
    %v1399 = vperm.slane %v1397, 0
    %v1400 = vperm.slane %v1397, 1
    %v1401 = vperm.slane %v1397, 2
    %v1402 = vperm.slane %v1397, 3
    %v1403 = vperm.slane %v1397, 4
    %v1404 = vperm.slane %v1397, 5
    %v1555 = vunpack.c.l.b16 %v1253
    %v1556 = vunpack.c.h.b16 %v1253
    %v1557 = vunpack.c.l.b16 %v1254
    %v1558 = vunpack.c.h.b16 %v1254
    %v1559 = vunpack.c.l.b16 %v1255
    %v1560 = vunpack.c.h.b16 %v1255
    %v1561 = vunpack.c.l.b16 %v1256
    %v1562 = vunpack.c.h.b16 %v1256
    %v1563 = vunpack.c.l.b16 %v1257
    %v1564 = vunpack.c.h.b16 %v1257
    %v1565 = vunpack.c.l.b16 %v1258
    %v1566 = vunpack.c.h.b16 %v1258
    %v1567 = vunpack.c.l.b16 %v1259
    %v1568 = vunpack.c.h.b16 %v1259
    %v1569 = vunpack.c.l.b16 %v1260
    %v1570 = vunpack.c.h.b16 %v1260
    %v1571 = vunpack.c.l.b16 %v1261
    %v1572 = vunpack.c.h.b16 %v1261
    %v1573 = vunpack.c.l.b16 %v1262
    %v1574 = vunpack.c.h.b16 %v1262
    %v1575 = vunpack.c.l.b16 %v1263
    %v1576 = vunpack.c.h.b16 %v1263
    %v1577 = vunpack.c.l.b16 %v1264
    %v1578 = vunpack.c.h.b16 %v1264
    %v1579 = vunpack.c.l.b16 %v1265
    %v1580 = vunpack.c.h.b16 %v1265
    %v1581 = vunpack.c.l.b16 %v1266
    %v1582 = vunpack.c.h.b16 %v1266
    %v1583 = vunpack.c.l.b16 %v1267
    %v1584 = vunpack.c.h.b16 %v1267
    %v1585 = vunpack.c.l.b16 %v1268
    %v1586 = vunpack.c.h.b16 %v1268
    %v1587 = vunpack.c.l.b16 %v1269
    %v1588 = vunpack.c.h.b16 %v1269
    %v1589 = vunpack.c.l.b16 %v1270
    %v1590 = vunpack.c.h.b16 %v1270
    %v1591 = vunpack.c.l.b16 %v1271
    %v1592 = vunpack.c.h.b16 %v1271
    %v1593 = vunpack.c.l.b16 %v1272
    %v1594 = vunpack.c.h.b16 %v1272
    %v1595 = vunpack.c.l.b16 %v1273
    %v1596 = vunpack.c.h.b16 %v1273
    %v1597 = vunpack.c.l.b16 %v1274
    %v1598 = vunpack.c.h.b16 %v1274
    %v1599 = vunpack.c.l.b16 %v1275
    %v1600 = vunpack.c.h.b16 %v1275
    %v1601 = vunpack.c.l.b16 %v1276
    %v1602 = vunpack.c.h.b16 %v1276
    %v1603 = vunpack.c.l.b16 %v1277
    %v1604 = vunpack.c.h.b16 %v1277
    %v1605 = vunpack.c.l.b16 %v1278
    %v1606 = vunpack.c.h.b16 %v1278
    %v1607 = vunpack.c.l.b16 %v1279
    %v1608 = vunpack.c.h.b16 %v1279
    %v1609 = vunpack.c.l.b16 %v1280
    %v1610 = vunpack.c.h.b16 %v1280
    %v1611 = vunpack.c.l.b16 %v1281
    %v1612 = vunpack.c.h.b16 %v1281
    %v1613 = vunpack.c.l.b16 %v1282
    %v1614 = vunpack.c.h.b16 %v1282
    %v1615 = vunpack.c.l.b16 %v1283
    %v1616 = vunpack.c.h.b16 %v1283
    %v1617 = vunpack.c.l.b16 %v1284
    %v1618 = vunpack.c.h.b16 %v1284
    %v1619 = vunpack.c.l.b16 %v1285
    %v1620 = vunpack.c.h.b16 %v1285
    %v1621 = vunpack.c.l.b16 %v1286
    %v1622 = vunpack.c.h.b16 %v1286
    %v1623 = vunpack.c.l.b16 %v1287
    %v1624 = vunpack.c.h.b16 %v1287
    %v1625 = vunpack.c.l.b16 %v1288
    %v1626 = vunpack.c.h.b16 %v1288
    %v1627 = vunpack.c.l.b16 %v1289
    %v1628 = vunpack.c.h.b16 %v1289
    %v1629 = vunpack.c.l.b16 %v1290
    %v1630 = vunpack.c.h.b16 %v1290
    %v1631 = vunpack.c.l.b16 %v1291
    %v1632 = vunpack.c.h.b16 %v1291
    %v1633 = vunpack.c.l.b16 %v1292
    %v1634 = vunpack.c.h.b16 %v1292
    %v1635 = vunpack.c.l.b16 %v1293
    %v1636 = vunpack.c.h.b16 %v1293
    %v1637 = vunpack.c.l.b16 %v1294
    %v1638 = vunpack.c.h.b16 %v1294
    %v1639 = vunpack.c.l.b16 %v1295
    %v1640 = vunpack.c.h.b16 %v1295
    %v1641 = vunpack.c.l.b16 %v1296
    %v1642 = vunpack.c.h.b16 %v1296
    %v1643 = vunpack.c.l.b16 %v1297
    %v1644 = vunpack.c.h.b16 %v1297
    %v1645 = vunpack.c.l.b16 %v1298
    %v1646 = vunpack.c.h.b16 %v1298
    %v1647 = vunpack.c.l.b16 %v1299
    %v1648 = vunpack.c.h.b16 %v1299
    %v1649 = vunpack.c.l.b16 %v1300
    %v1650 = vunpack.c.h.b16 %v1300
    %v1651 = vunpack.c.l.b16 %v1301
    %v1652 = vunpack.c.h.b16 %v1301
    %v1653 = vunpack.c.l.b16 %v1302
    %v1654 = vunpack.c.h.b16 %v1302
    %v1655 = vunpack.c.l.b16 %v1303
    %v1656 = vunpack.c.h.b16 %v1303
    %v1657 = vunpack.c.l.b16 %v1304
    %v1658 = vunpack.c.h.b16 %v1304
    %v1659 = vunpack.c.l.b16 %v1305
    %v1660 = vunpack.c.h.b16 %v1305
    %v1661 = vunpack.c.l.b16 %v1306
    %v1662 = vunpack.c.h.b16 %v1306
    %v1663 = vunpack.c.l.b16 %v1307
    %v1664 = vunpack.c.h.b16 %v1307
    %v1665 = vunpack.c.l.b16 %v1308
    %v1666 = vunpack.c.h.b16 %v1308
    %v1667 = vunpack.c.l.b16 %v1309
    %v1668 = vunpack.c.h.b16 %v1309
    %v1669 = vunpack.c.l.b16 %v1310
    %v1670 = vunpack.c.h.b16 %v1310
    %v1671 = vunpack.c.l.b16 %v1311
    %v1672 = vunpack.c.h.b16 %v1311
    %v1673 = vunpack.c.l.b16 %v1312
    %v1674 = vunpack.c.h.b16 %v1312
    %v1675 = vunpack.c.l.b16 %v1313
    %v1676 = vunpack.c.h.b16 %v1313
    %v1677 = vunpack.c.l.b16 %v1314
    %v1678 = vunpack.c.h.b16 %v1314
    %v1679 = vunpack.c.l.b16 %v1315
    %v1680 = vunpack.c.h.b16 %v1315
    %v1681 = vunpack.c.l.b16 %v1316
    %v1682 = vunpack.c.h.b16 %v1316
    %v1683 = vunpack.c.l.b16 %v1317
    %v1684 = vunpack.c.h.b16 %v1317
    %v1685 = vunpack.c.l.b16 %v1318
    %v1686 = vunpack.c.h.b16 %v1318
    %v1687 = vunpack.c.l.b16 %v1319
    %v1688 = vunpack.c.h.b16 %v1319
    %v1689 = vunpack.c.l.b16 %v1320
    %v1690 = vunpack.c.h.b16 %v1320
    %v1691 = vunpack.c.l.b16 %v1321
    %v1692 = vunpack.c.h.b16 %v1321
    %v1693 = vunpack.c.l.b16 %v1322
    %v1694 = vunpack.c.h.b16 %v1322
    %v1695 = vunpack.c.l.b16 %v1323
    %v1696 = vunpack.c.h.b16 %v1323
    %v1697 = vunpack.c.l.b16 %v1324
    %v1698 = vunpack.c.h.b16 %v1324
    %v1699 = vunpack.c.l.b16 %v1325
    %v1700 = vunpack.c.h.b16 %v1325
    %v1701 = vunpack.c.l.b16 %v1326
    %v1702 = vunpack.c.h.b16 %v1326
    %v1703 = vunpack.c.l.b16 %v1327
    %v1704 = vunpack.c.h.b16 %v1327
    %v1705 = vunpack.c.l.b16 %v1328
    %v1706 = vunpack.c.h.b16 %v1328
    %v1707 = vunpack.c.l.b16 %v1329
    %v1708 = vunpack.c.h.b16 %v1329
    %v1709 = vunpack.c.l.b16 %v1330
    %v1710 = vunpack.c.h.b16 %v1330
    %v1711 = vunpack.c.l.b16 %v1331
    %v1712 = vunpack.c.h.b16 %v1331
    %v1713 = vunpack.c.l.b16 %v1332
    %v1714 = vunpack.c.h.b16 %v1332
    %v1715 = vunpack.c.l.b16 %v1333
    %v1716 = vunpack.c.h.b16 %v1333
    %v1717 = vunpack.c.l.b16 %v1334
    %v1718 = vunpack.c.h.b16 %v1334
    %v1719 = vunpack.c.l.b16 %v1335
    %v1720 = vunpack.c.h.b16 %v1335
    %v1721 = vunpack.c.l.b16 %v1336
    %v1722 = vunpack.c.h.b16 %v1336
    %v1723 = vunpack.c.l.b16 %v1337
    %v1724 = vunpack.c.h.b16 %v1337
    %v1725 = vunpack.c.l.b16 %v1338
    %v1726 = vunpack.c.h.b16 %v1338
    %v1727 = vunpack.c.l.b16 %v1339
    %v1728 = vunpack.c.h.b16 %v1339
    %v1729 = vunpack.c.l.b16 %v1340
    %v1730 = vunpack.c.h.b16 %v1340
    %v1731 = vunpack.c.l.b16 %v1341
    %v1732 = vunpack.c.h.b16 %v1341
    %v1733 = vunpack.c.l.b16 %v1342
    %v1734 = vunpack.c.h.b16 %v1342
    %v1735 = vunpack.c.l.b16 %v1343
    %v1736 = vunpack.c.h.b16 %v1343
    %v1737 = vunpack.c.l.b16 %v1344
    %v1738 = vunpack.c.h.b16 %v1344
    %v1739 = vunpack.c.l.b16 %v1345
    %v1740 = vunpack.c.h.b16 %v1345
    %v1741 = vunpack.c.l.b16 %v1346
    %v1742 = vunpack.c.h.b16 %v1346
    %v1743 = vunpack.c.l.b16 %v1347
    %v1744 = vunpack.c.h.b16 %v1347
    %v1745 = vunpack.c.l.b16 %v1348
    %v1746 = vunpack.c.h.b16 %v1348
    %v1747 = vunpack.c.l.b16 %v1349
    %v1748 = vunpack.c.h.b16 %v1349
    %v1749 = vunpack.c.l.b16 %v1350
    %v1750 = vunpack.c.h.b16 %v1350
    %v1751 = vunpack.c.l.b16 %v1351
    %v1752 = vunpack.c.h.b16 %v1351
    %v1753 = vunpack.c.l.b16 %v1352
    %v1754 = vunpack.c.h.b16 %v1352
    %v1755 = vunpack.c.l.b16 %v1353
    %v1756 = vunpack.c.h.b16 %v1353
    %v1757 = vunpack.c.l.b16 %v1354
    %v1758 = vunpack.c.h.b16 %v1354
    %v1759 = vunpack.c.l.b16 %v1355
    %v1760 = vunpack.c.h.b16 %v1355
    %v1761 = vunpack.c.l.b16 %v1356
    %v1762 = vunpack.c.h.b16 %v1356
    %v1763 = vunpack.c.l.b16 %v1357
    %v1764 = vunpack.c.h.b16 %v1357
    %v1765 = vunpack.c.l.b16 %v1358
    %v1766 = vunpack.c.h.b16 %v1358
    %v1767 = vunpack.c.l.b16 %v1359
    %v1768 = vunpack.c.h.b16 %v1359
    %v1769 = vunpack.c.l.b16 %v1360
    %v1770 = vunpack.c.h.b16 %v1360
    %v1771 = vunpack.c.l.b16 %v1361
    %v1772 = vunpack.c.h.b16 %v1361
    %v1773 = vunpack.c.l.b16 %v1362
    %v1774 = vunpack.c.h.b16 %v1362
    %v1775 = vunpack.c.l.b16 %v1363
    %v1776 = vunpack.c.h.b16 %v1363
    %v1777 = vunpack.c.l.b16 %v1364
    %v1778 = vunpack.c.h.b16 %v1364
    %v1779 = vunpack.c.l.b16 %v1365
    %v1780 = vunpack.c.h.b16 %v1365
    %v1781 = vunpack.c.l.b16 %v1366
    %v1782 = vunpack.c.h.b16 %v1366
    %v1783 = vunpack.c.l.b16 %v1367
    %v1784 = vunpack.c.h.b16 %v1367
    %v1785 = vunpack.c.l.b16 %v1368
    %v1786 = vunpack.c.h.b16 %v1368
    %v1787 = vunpack.c.l.b16 %v1369
    %v1788 = vunpack.c.h.b16 %v1369
    %v1789 = vunpack.c.l.b16 %v1370
    %v1790 = vunpack.c.h.b16 %v1370
    %v1791 = vunpack.c.l.b16 %v1371
    %v1792 = vunpack.c.h.b16 %v1371
    %v1793 = vunpack.c.l.b16 %v1372
    %v1794 = vunpack.c.h.b16 %v1372
    %v1795 = vunpack.c.l.b16 %v1373
    %v1796 = vunpack.c.h.b16 %v1373
    %v1797 = vunpack.c.l.b16 %v1374
    %v1798 = vunpack.c.h.b16 %v1374
    %v1799 = vunpack.c.l.b16 %v1375
    %v1800 = vunpack.c.h.b16 %v1375
    %v1801 = vunpack.c.l.b16 %v1376
    %v1802 = vunpack.c.h.b16 %v1376
    %v1803 = vunpack.c.l.b16 %v1377
    %v1804 = vunpack.c.h.b16 %v1377
    %v1805 = vunpack.c.l.b16 %v1378
    %v1806 = vunpack.c.h.b16 %v1378
    %v1807 = vunpack.c.l.b16 %v1379
    %v1808 = vunpack.c.h.b16 %v1379
    %v1809 = vunpack.c.l.b16 %v1380
    %v1810 = vunpack.c.h.b16 %v1380
    %v1811 = vunpack.c.l.b16 %v1381
    %v1812 = vunpack.c.h.b16 %v1381
    %v1813 = vunpack.c.l.b16 %v1382
    %v1814 = vunpack.c.h.b16 %v1382
    %v1815 = vunpack.c.l.b16 %v1383
    %v1816 = vunpack.c.h.b16 %v1383
    %v1817 = vunpack.c.l.b16 %v1384
    %v1818 = vunpack.c.h.b16 %v1384
    %v1819 = vunpack.c.l.b16 %v1385
    %v1820 = vunpack.c.h.b16 %v1385
    %v1821 = vunpack.c.l.b16 %v1386
    %v1822 = vunpack.c.h.b16 %v1386
    %v1823 = vunpack.c.l.b16 %v1387
    %v1824 = vunpack.c.h.b16 %v1387
    %v1825 = vunpack.c.l.b16 %v1388
    %v1826 = vunpack.c.h.b16 %v1388
    %v1827 = vunpack.c.l.b16 %v1389
    %v1828 = vunpack.c.h.b16 %v1389
    %v1829 = vunpack.c.l.b16 %v1390
    %v1830 = vunpack.c.h.b16 %v1390
    %v1831 = vunpack.c.l.b16 %v1391
    %v1832 = vunpack.c.h.b16 %v1391
    %v1833 = vunpack.c.l.b16 %v1392
    %v1834 = vunpack.c.h.b16 %v1392
    %v1835 = vunpack.c.l.b16 %v1393
    %v1836 = vunpack.c.h.b16 %v1393
    %v1837 = vunpack.c.l.b16 %v1394
    %v1838 = vunpack.c.h.b16 %v1394
    %v1839 = vunpack.c.l.b16 %v1395
    %v1840 = vunpack.c.h.b16 %v1395
    %v1841 = vunpack.c.l.b16 %v1396
    %v1842 = vunpack.c.h.b16 %v1396
    %v1843 = vpack.c.b16 %v1561, %v1555
    %v1844 = vpack.c.b16 %v1562, %v1556
    %v1845 = vpack.c.b16 %v1563, %v1557
    %v1846 = vpack.c.b16 %v1564, %v1558
    %v1847 = vpack.c.b16 %v1565, %v1559
    %v1848 = vpack.c.b16 %v1566, %v1560
    %v1849 = vpack.c.b16 %v1573, %v1567
    %v1850 = vpack.c.b16 %v1574, %v1568
    %v1851 = vpack.c.b16 %v1575, %v1569
    %v1852 = vpack.c.b16 %v1576, %v1570
    %v1853 = vpack.c.b16 %v1577, %v1571
    %v1854 = vpack.c.b16 %v1578, %v1572
    %v1855 = vpack.c.b16 %v1585, %v1579
    %v1856 = vpack.c.b16 %v1586, %v1580
    %v1857 = vpack.c.b16 %v1587, %v1581
    %v1858 = vpack.c.b16 %v1588, %v1582
    %v1859 = vpack.c.b16 %v1589, %v1583
    %v1860 = vpack.c.b16 %v1590, %v1584
    %v1861 = vpack.c.b16 %v1597, %v1591
    %v1862 = vpack.c.b16 %v1598, %v1592
    %v1863 = vpack.c.b16 %v1599, %v1593
    %v1864 = vpack.c.b16 %v1600, %v1594
    %v1865 = vpack.c.b16 %v1601, %v1595
    %v1866 = vpack.c.b16 %v1602, %v1596
    %v1867 = vpack.c.b16 %v1609, %v1603
    %v1868 = vpack.c.b16 %v1610, %v1604
    %v1869 = vpack.c.b16 %v1611, %v1605
    %v1870 = vpack.c.b16 %v1612, %v1606
    %v1871 = vpack.c.b16 %v1613, %v1607
    %v1872 = vpack.c.b16 %v1614, %v1608
    %v1873 = vpack.c.b16 %v1621, %v1615
    %v1874 = vpack.c.b16 %v1622, %v1616
    %v1875 = vpack.c.b16 %v1623, %v1617
    %v1876 = vpack.c.b16 %v1624, %v1618
    %v1877 = vpack.c.b16 %v1625, %v1619
    %v1878 = vpack.c.b16 %v1626, %v1620
    %v1879 = vpack.c.b16 %v1633, %v1627
    %v1880 = vpack.c.b16 %v1634, %v1628
    %v1881 = vpack.c.b16 %v1635, %v1629
    %v1882 = vpack.c.b16 %v1636, %v1630
    %v1883 = vpack.c.b16 %v1637, %v1631
    %v1884 = vpack.c.b16 %v1638, %v1632
    %v1885 = vpack.c.b16 %v1645, %v1639
    %v1886 = vpack.c.b16 %v1646, %v1640
    %v1887 = vpack.c.b16 %v1647, %v1641
    %v1888 = vpack.c.b16 %v1648, %v1642
    %v1889 = vpack.c.b16 %v1649, %v1643
    %v1890 = vpack.c.b16 %v1650, %v1644
    %v1891 = vpack.c.b16 %v1657, %v1651
    %v1892 = vpack.c.b16 %v1658, %v1652
    %v1893 = vpack.c.b16 %v1659, %v1653
    %v1894 = vpack.c.b16 %v1660, %v1654
    %v1895 = vpack.c.b16 %v1661, %v1655
    %v1896 = vpack.c.b16 %v1662, %v1656
    %v1897 = vpack.c.b16 %v1669, %v1663
    %v1898 = vpack.c.b16 %v1670, %v1664
    %v1899 = vpack.c.b16 %v1671, %v1665
    %v1900 = vpack.c.b16 %v1672, %v1666
    %v1901 = vpack.c.b16 %v1673, %v1667
    %v1902 = vpack.c.b16 %v1674, %v1668
    %v1903 = vpack.c.b16 %v1681, %v1675
    %v1904 = vpack.c.b16 %v1682, %v1676
    %v1905 = vpack.c.b16 %v1683, %v1677
    %v1906 = vpack.c.b16 %v1684, %v1678
    %v1907 = vpack.c.b16 %v1685, %v1679
    %v1908 = vpack.c.b16 %v1686, %v1680
    %v1909 = vpack.c.b16 %v1693, %v1687
    %v1910 = vpack.c.b16 %v1694, %v1688
    %v1911 = vpack.c.b16 %v1695, %v1689
    %v1912 = vpack.c.b16 %v1696, %v1690
    %v1913 = vpack.c.b16 %v1697, %v1691
    %v1914 = vpack.c.b16 %v1698, %v1692
    %v1915 = vpack.c.b16 %v1705, %v1699
    %v1916 = vpack.c.b16 %v1706, %v1700
    %v1917 = vpack.c.b16 %v1707, %v1701
    %v1918 = vpack.c.b16 %v1708, %v1702
    %v1919 = vpack.c.b16 %v1709, %v1703
    %v1920 = vpack.c.b16 %v1710, %v1704
    %v1921 = vpack.c.b16 %v1717, %v1711
    %v1922 = vpack.c.b16 %v1718, %v1712
    %v1923 = vpack.c.b16 %v1719, %v1713
    %v1924 = vpack.c.b16 %v1720, %v1714
    %v1925 = vpack.c.b16 %v1721, %v1715
    %v1926 = vpack.c.b16 %v1722, %v1716
    %v1927 = vpack.c.b16 %v1729, %v1723
    %v1928 = vpack.c.b16 %v1730, %v1724
    %v1929 = vpack.c.b16 %v1731, %v1725
    %v1930 = vpack.c.b16 %v1732, %v1726
    %v1931 = vpack.c.b16 %v1733, %v1727
    %v1932 = vpack.c.b16 %v1734, %v1728
    %v1933 = vpack.c.b16 %v1741, %v1735
    %v1934 = vpack.c.b16 %v1742, %v1736
    %v1935 = vpack.c.b16 %v1743, %v1737
    %v1936 = vpack.c.b16 %v1744, %v1738
    %v1937 = vpack.c.b16 %v1745, %v1739
    %v1938 = vpack.c.b16 %v1746, %v1740
    %v1939 = vpack.c.b16 %v1753, %v1747
    %v1940 = vpack.c.b16 %v1754, %v1748
    %v1941 = vpack.c.b16 %v1755, %v1749
    %v1942 = vpack.c.b16 %v1756, %v1750
    %v1943 = vpack.c.b16 %v1757, %v1751
    %v1944 = vpack.c.b16 %v1758, %v1752
    %v1945 = vpack.c.b16 %v1765, %v1759
    %v1946 = vpack.c.b16 %v1766, %v1760
    %v1947 = vpack.c.b16 %v1767, %v1761
    %v1948 = vpack.c.b16 %v1768, %v1762
    %v1949 = vpack.c.b16 %v1769, %v1763
    %v1950 = vpack.c.b16 %v1770, %v1764
    %v1951 = vpack.c.b16 %v1777, %v1771
    %v1952 = vpack.c.b16 %v1778, %v1772
    %v1953 = vpack.c.b16 %v1779, %v1773
    %v1954 = vpack.c.b16 %v1780, %v1774
    %v1955 = vpack.c.b16 %v1781, %v1775
    %v1956 = vpack.c.b16 %v1782, %v1776
    %v1957 = vpack.c.b16 %v1789, %v1783
    %v1958 = vpack.c.b16 %v1790, %v1784
    %v1959 = vpack.c.b16 %v1791, %v1785
    %v1960 = vpack.c.b16 %v1792, %v1786
    %v1961 = vpack.c.b16 %v1793, %v1787
    %v1962 = vpack.c.b16 %v1794, %v1788
    %v1963 = vpack.c.b16 %v1801, %v1795
    %v1964 = vpack.c.b16 %v1802, %v1796
    %v1965 = vpack.c.b16 %v1803, %v1797
    %v1966 = vpack.c.b16 %v1804, %v1798
    %v1967 = vpack.c.b16 %v1805, %v1799
    %v1968 = vpack.c.b16 %v1806, %v1800
    %v1969 = vpack.c.b16 %v1813, %v1807
    %v1970 = vpack.c.b16 %v1814, %v1808
    %v1971 = vpack.c.b16 %v1815, %v1809
    %v1972 = vpack.c.b16 %v1816, %v1810
    %v1973 = vpack.c.b16 %v1817, %v1811
    %v1974 = vpack.c.b16 %v1818, %v1812
    %v1975 = vpack.c.b16 %v1825, %v1819
    %v1976 = vpack.c.b16 %v1826, %v1820
    %v1977 = vpack.c.b16 %v1827, %v1821
    %v1978 = vpack.c.b16 %v1828, %v1822
    %v1979 = vpack.c.b16 %v1829, %v1823
    %v1980 = vpack.c.b16 %v1830, %v1824
    %v1981 = vpack.c.b16 %v1837, %v1831
    %v1982 = vpack.c.b16 %v1838, %v1832
    %v1983 = vpack.c.b16 %v1839, %v1833
    %v1984 = vpack.c.b16 %v1840, %v1834
    %v1985 = vpack.c.b16 %v1841, %v1835
    %v1986 = vpack.c.b16 %v1842, %v1836
    %2131 = vmatpush.bf16.msra.mxu0 %v1885
    %2132 = vmatpush.bf16.msra.mxu0 %v1879
    %2133 = vmatpush.bf16.msra.mxu0 %v1873
    %2134 = vmatpush.bf16.msra.mxu0 %v1867
    %2135 = vmatpush.bf16.msra.mxu0 %v1861
    %2136 = vmatpush.bf16.msra.mxu0 %v1855
    %2137 = vmatpush.bf16.msra.mxu0 %v1849
    %2138 = vmatpush.bf16.msra.mxu0 %v1843
    %2139 = vmatmul.bf16.gmra.mxu0 %v1250
    %v2140 = vpop.f32.mrf.mxu0
    %v2141 = vadd.f32 %v1399, %v2140
    %v2142 = vpop.f32.mrf.mxu0
    %2143 = vdwg.mxu0
    %2144 = vmatpush.bf16.msra.mxu0 %v1933
    %2145 = vmatpush.bf16.msra.mxu0 %v1927
    %2146 = vmatpush.bf16.msra.mxu0 %v1921
    %2147 = vmatpush.bf16.msra.mxu0 %v1915
    %2148 = vmatpush.bf16.msra.mxu0 %v1909
    %2149 = vmatpush.bf16.msra.mxu0 %v1903
    %2150 = vmatpush.bf16.msra.mxu0 %v1897
    %2151 = vmatpush.bf16.msra.mxu0 %v1891
    %2152 = vmatmul.bf16.gmra.mxu0 %v1251
    %v2153 = vpop.f32.mrf.mxu0
    %v2154 = vadd.f32 %v2141, %v2153
    %v2155 = vpop.f32.mrf.mxu0
    %2156 = vdwg.mxu0
    %2157 = vmatpush.bf16.msra.mxu0 %v1981
    %2158 = vmatpush.bf16.msra.mxu0 %v1975
    %2159 = vmatpush.bf16.msra.mxu0 %v1969
    %2160 = vmatpush.bf16.msra.mxu0 %v1963
    %2161 = vmatpush.bf16.msra.mxu0 %v1957
    %2162 = vmatpush.bf16.msra.mxu0 %v1951
    %2163 = vmatpush.bf16.msra.mxu0 %v1945
    %2164 = vmatpush.bf16.msra.mxu0 %v1939
    %2165 = vmatmul.bf16.gmra.mxu0 %v1252
    %v2166 = vpop.f32.mrf.mxu0
    %v2167 = vadd.f32 %v2154, %v2166
    %v2168 = vpop.f32.mrf.mxu0
    %2169 = vdwg.mxu0
    %2170 = vmatpush.bf16.msra.mxu0 %v1886
    %2171 = vmatpush.bf16.msra.mxu0 %v1880
    %2172 = vmatpush.bf16.msra.mxu0 %v1874
    %2173 = vmatpush.bf16.msra.mxu0 %v1868
    %2174 = vmatpush.bf16.msra.mxu0 %v1862
    %2175 = vmatpush.bf16.msra.mxu0 %v1856
    %2176 = vmatpush.bf16.msra.mxu0 %v1850
    %2177 = vmatpush.bf16.msra.mxu0 %v1844
    %2178 = vmatmul.bf16.gmra.mxu0 %v1250
    %v2179 = vpop.f32.mrf.mxu0
    %v2180 = vadd.f32 %v1400, %v2179
    %v2181 = vpop.f32.mrf.mxu0
    %2182 = vdwg.mxu0
    %2183 = vmatpush.bf16.msra.mxu0 %v1934
    %2184 = vmatpush.bf16.msra.mxu0 %v1928
    %2185 = vmatpush.bf16.msra.mxu0 %v1922
    %2186 = vmatpush.bf16.msra.mxu0 %v1916
    %2187 = vmatpush.bf16.msra.mxu0 %v1910
    %2188 = vmatpush.bf16.msra.mxu0 %v1904
    %2189 = vmatpush.bf16.msra.mxu0 %v1898
    %2190 = vmatpush.bf16.msra.mxu0 %v1892
    %2191 = vmatmul.bf16.gmra.mxu0 %v1251
    %v2192 = vpop.f32.mrf.mxu0
    %v2193 = vadd.f32 %v2180, %v2192
    %v2194 = vpop.f32.mrf.mxu0
    %2195 = vdwg.mxu0
    %2196 = vmatpush.bf16.msra.mxu0 %v1982
    %2197 = vmatpush.bf16.msra.mxu0 %v1976
    %2198 = vmatpush.bf16.msra.mxu0 %v1970
    %2199 = vmatpush.bf16.msra.mxu0 %v1964
    %2200 = vmatpush.bf16.msra.mxu0 %v1958
    %2201 = vmatpush.bf16.msra.mxu0 %v1952
    %2202 = vmatpush.bf16.msra.mxu0 %v1946
    %2203 = vmatpush.bf16.msra.mxu0 %v1940
    %2204 = vmatmul.bf16.gmra.mxu0 %v1252
    %v2205 = vpop.f32.mrf.mxu0
    %v2206 = vadd.f32 %v2193, %v2205
    %v2207 = vpop.f32.mrf.mxu0
    %2208 = vdwg.mxu0
    %2209 = vmatpush.bf16.msra.mxu0 %v1887
    %2210 = vmatpush.bf16.msra.mxu0 %v1881
    %2211 = vmatpush.bf16.msra.mxu0 %v1875
    %2212 = vmatpush.bf16.msra.mxu0 %v1869
    %2213 = vmatpush.bf16.msra.mxu0 %v1863
    %2214 = vmatpush.bf16.msra.mxu0 %v1857
    %2215 = vmatpush.bf16.msra.mxu0 %v1851
    %2216 = vmatpush.bf16.msra.mxu0 %v1845
    %2217 = vmatmul.bf16.gmra.mxu0 %v1250
    %v2218 = vpop.f32.mrf.mxu0
    %v2219 = vadd.f32 %v1401, %v2218
    %v2220 = vpop.f32.mrf.mxu0
    %2221 = vdwg.mxu0
    %2222 = vmatpush.bf16.msra.mxu0 %v1935
    %2223 = vmatpush.bf16.msra.mxu0 %v1929
    %2224 = vmatpush.bf16.msra.mxu0 %v1923
    %2225 = vmatpush.bf16.msra.mxu0 %v1917
    %2226 = vmatpush.bf16.msra.mxu0 %v1911
    %2227 = vmatpush.bf16.msra.mxu0 %v1905
    %2228 = vmatpush.bf16.msra.mxu0 %v1899
    %2229 = vmatpush.bf16.msra.mxu0 %v1893
    %2230 = vmatmul.bf16.gmra.mxu0 %v1251
    %v2231 = vpop.f32.mrf.mxu0
    %v2232 = vadd.f32 %v2219, %v2231
    %v2233 = vpop.f32.mrf.mxu0
    %2234 = vdwg.mxu0
    %2235 = vmatpush.bf16.msra.mxu0 %v1983
    %2236 = vmatpush.bf16.msra.mxu0 %v1977
    %2237 = vmatpush.bf16.msra.mxu0 %v1971
    %2238 = vmatpush.bf16.msra.mxu0 %v1965
    %2239 = vmatpush.bf16.msra.mxu0 %v1959
    %2240 = vmatpush.bf16.msra.mxu0 %v1953
    %2241 = vmatpush.bf16.msra.mxu0 %v1947
    %2242 = vmatpush.bf16.msra.mxu0 %v1941
    %2243 = vmatmul.bf16.gmra.mxu0 %v1252
    %v2244 = vpop.f32.mrf.mxu0
    %v2245 = vadd.f32 %v2232, %v2244
    %v2246 = vpop.f32.mrf.mxu0
    %2247 = vdwg.mxu0
    %2248 = vmatpush.bf16.msra.mxu0 %v1888
    %2249 = vmatpush.bf16.msra.mxu0 %v1882
    %2250 = vmatpush.bf16.msra.mxu0 %v1876
    %2251 = vmatpush.bf16.msra.mxu0 %v1870
    %2252 = vmatpush.bf16.msra.mxu0 %v1864
    %2253 = vmatpush.bf16.msra.mxu0 %v1858
    %2254 = vmatpush.bf16.msra.mxu0 %v1852
    %2255 = vmatpush.bf16.msra.mxu0 %v1846
    %2256 = vmatmul.bf16.gmra.mxu0 %v1250
    %v2257 = vpop.f32.mrf.mxu0
    %v2258 = vadd.f32 %v1402, %v2257
    %v2259 = vpop.f32.mrf.mxu0
    %2260 = vdwg.mxu0
    %2261 = vmatpush.bf16.msra.mxu0 %v1936
    %2262 = vmatpush.bf16.msra.mxu0 %v1930
    %2263 = vmatpush.bf16.msra.mxu0 %v1924
    %2264 = vmatpush.bf16.msra.mxu0 %v1918
    %2265 = vmatpush.bf16.msra.mxu0 %v1912
    %2266 = vmatpush.bf16.msra.mxu0 %v1906
    %2267 = vmatpush.bf16.msra.mxu0 %v1900
    %2268 = vmatpush.bf16.msra.mxu0 %v1894
    %2269 = vmatmul.bf16.gmra.mxu0 %v1251
    %v2270 = vpop.f32.mrf.mxu0
    %v2271 = vadd.f32 %v2258, %v2270
    %v2272 = vpop.f32.mrf.mxu0
    %2273 = vdwg.mxu0
    %2274 = vmatpush.bf16.msra.mxu0 %v1984
    %2275 = vmatpush.bf16.msra.mxu0 %v1978
    %2276 = vmatpush.bf16.msra.mxu0 %v1972
    %2277 = vmatpush.bf16.msra.mxu0 %v1966
    %2278 = vmatpush.bf16.msra.mxu0 %v1960
    %2279 = vmatpush.bf16.msra.mxu0 %v1954
    %2280 = vmatpush.bf16.msra.mxu0 %v1948
    %2281 = vmatpush.bf16.msra.mxu0 %v1942
    %2282 = vmatmul.bf16.gmra.mxu0 %v1252
    %v2283 = vpop.f32.mrf.mxu0
    %v2284 = vadd.f32 %v2271, %v2283
    %v2285 = vpop.f32.mrf.mxu0
    %2286 = vdwg.mxu0
    %2287 = vmatpush.bf16.msra.mxu0 %v1889
    %2288 = vmatpush.bf16.msra.mxu0 %v1883
    %2289 = vmatpush.bf16.msra.mxu0 %v1877
    %2290 = vmatpush.bf16.msra.mxu0 %v1871
    %2291 = vmatpush.bf16.msra.mxu0 %v1865
    %2292 = vmatpush.bf16.msra.mxu0 %v1859
    %2293 = vmatpush.bf16.msra.mxu0 %v1853
    %2294 = vmatpush.bf16.msra.mxu0 %v1847
    %2295 = vmatmul.bf16.gmra.mxu0 %v1250
    %v2296 = vpop.f32.mrf.mxu0
    %v2297 = vadd.f32 %v1403, %v2296
    %v2298 = vpop.f32.mrf.mxu0
    %2299 = vdwg.mxu0
    %2300 = vmatpush.bf16.msra.mxu0 %v1937
    %2301 = vmatpush.bf16.msra.mxu0 %v1931
    %2302 = vmatpush.bf16.msra.mxu0 %v1925
    %2303 = vmatpush.bf16.msra.mxu0 %v1919
    %2304 = vmatpush.bf16.msra.mxu0 %v1913
    %2305 = vmatpush.bf16.msra.mxu0 %v1907
    %2306 = vmatpush.bf16.msra.mxu0 %v1901
    %2307 = vmatpush.bf16.msra.mxu0 %v1895
    %2308 = vmatmul.bf16.gmra.mxu0 %v1251
    %v2309 = vpop.f32.mrf.mxu0
    %v2310 = vadd.f32 %v2297, %v2309
    %v2311 = vpop.f32.mrf.mxu0
    %2312 = vdwg.mxu0
    %2313 = vmatpush.bf16.msra.mxu0 %v1985
    %2314 = vmatpush.bf16.msra.mxu0 %v1979
    %2315 = vmatpush.bf16.msra.mxu0 %v1973
    %2316 = vmatpush.bf16.msra.mxu0 %v1967
    %2317 = vmatpush.bf16.msra.mxu0 %v1961
    %2318 = vmatpush.bf16.msra.mxu0 %v1955
    %2319 = vmatpush.bf16.msra.mxu0 %v1949
    %2320 = vmatpush.bf16.msra.mxu0 %v1943
    %2321 = vmatmul.bf16.gmra.mxu0 %v1252
    %v2322 = vpop.f32.mrf.mxu0
    %v2323 = vadd.f32 %v2310, %v2322
    %v2324 = vpop.f32.mrf.mxu0
    %2325 = vdwg.mxu0
    %2326 = vmatpush.bf16.msra.mxu0 %v1890
    %2327 = vmatpush.bf16.msra.mxu0 %v1884
    %2328 = vmatpush.bf16.msra.mxu0 %v1878
    %2329 = vmatpush.bf16.msra.mxu0 %v1872
    %2330 = vmatpush.bf16.msra.mxu0 %v1866
    %2331 = vmatpush.bf16.msra.mxu0 %v1860
    %2332 = vmatpush.bf16.msra.mxu0 %v1854
    %2333 = vmatpush.bf16.msra.mxu0 %v1848
    %2334 = vmatmul.bf16.gmra.mxu0 %v1250
    %v2335 = vpop.f32.mrf.mxu0
    %v2336 = vadd.f32 %v1404, %v2335
    %v2337 = vpop.f32.mrf.mxu0
    %2338 = vdwg.mxu0
    %2339 = vmatpush.bf16.msra.mxu0 %v1938
    %2340 = vmatpush.bf16.msra.mxu0 %v1932
    %2341 = vmatpush.bf16.msra.mxu0 %v1926
    %2342 = vmatpush.bf16.msra.mxu0 %v1920
    %2343 = vmatpush.bf16.msra.mxu0 %v1914
    %2344 = vmatpush.bf16.msra.mxu0 %v1908
    %2345 = vmatpush.bf16.msra.mxu0 %v1902
    %2346 = vmatpush.bf16.msra.mxu0 %v1896
    %2347 = vmatmul.bf16.gmra.mxu0 %v1251
    %v2348 = vpop.f32.mrf.mxu0
    %v2349 = vadd.f32 %v2336, %v2348
    %v2350 = vpop.f32.mrf.mxu0
    %2351 = vdwg.mxu0
    %2352 = vmatpush.bf16.msra.mxu0 %v1986
    %2353 = vmatpush.bf16.msra.mxu0 %v1980
    %2354 = vmatpush.bf16.msra.mxu0 %v1974
    %2355 = vmatpush.bf16.msra.mxu0 %v1968
    %2356 = vmatpush.bf16.msra.mxu0 %v1962
    %2357 = vmatpush.bf16.msra.mxu0 %v1956
    %2358 = vmatpush.bf16.msra.mxu0 %v1950
    %2359 = vmatpush.bf16.msra.mxu0 %v1944
    %2360 = vmatmul.bf16.gmra.mxu0 %v1252
    %v2361 = vpop.f32.mrf.mxu0
    %v2362 = vadd.f32 %v2349, %v2361
    %v2363 = vpop.f32.mrf.mxu0
    %2364 = vdwg.mxu0
    %v2365 = vmax.f32 %v2167, 0.0
    %v2366 = vmax.f32 %v2206, 0.0
    %v2367 = vmax.f32 %v2245, 0.0
    %v2368 = vmax.f32 %v2284, 0.0
    %v2369 = vmax.f32 %v2323, 0.0
    %v2370 = vmax.f32 %v2362, 0.0
    %v2377 = vrot.slane %v2366, 6
    %v2378 = vrot.slane %v2367, 4
    %v2379 = vrot.slane %v2368, 2
    %v2380 = vrot.slane %v2370, 6
    %vm2381 = vcmask 1041408
    %v2382 = vsel %vm2381, %v2365, %v2377
    %vm2383 = vcmask 1045508
    %v2384 = vsel %vm2383, %v2378, %v2379
    %vm2385 = vcmask 1043456
    %v2386 = vsel %vm2385, %v2382, %v2384
    %v2387 = vsel %vm2381, %v2369, %v2380
    %2390 = vst [vmem:[#allocation7] sm:$0xff] %v2386
    %2391 = vst [vmem:[#allocation7 + $0x8] sm:$0xf] %v2387
    // Predicated region
    $region26: #{conv_technical_discussion_forward.1} parent=1 // pred_check
      _
    $region27: #{conv_technical_discussion_forward.1} parent=1 // pred_check_branch
      %2393 = sbr.rel (0) target = $region29
    $region28: #{conv_technical_discussion_forward.1} parent=1 // pred_region
      %2395 = vsyncadd [#allocation5], 0
      %s2397 = sshll.u32 [#allocation7], 4
      %s2398 = int_to_ptr.vmem [resolvable:$true] %s2397
      %s2399 = sshll.u32 %s5, 4
      %s2400 = int_to_ptr.hbm [resolvable:$true] %s2399
      %2402 = dma.vmem_to_hbm [thread:$0]  %s2398, 192, %s2400, [#allocation5]
    $region29: #{conv_technical_discussion_forward.1} parent=1 // pred_fallthru
      _
    // Predicated region
    $region30: #{conv_technical_discussion_forward.1} parent=1 // pred_check
      _
    $region31: #{conv_technical_discussion_forward.1} parent=1 // pred_check_branch
      %2404 = sbr.rel (0) target = $region33
    $region32: #{conv_technical_discussion_forward.1} parent=1 // pred_region
      %2406 = dma.done [#allocation5], 192
    $region33: #{conv_technical_discussion_forward.1} parent=1 // pred_fallthru
      _
    %2407 = vsyncpa [#allocation5], 1
    %2408 = vsyncpa [#allocation6], 1

</llo_original>
